<compile_context>
chip_gen: v7x
topology: tpu7x:2x2x1
jax: 0.10.0
libtpu: 0.0.40
codegen_flags: <defaults>
</compile_context>

<pallas_src>
import jax
import jax.numpy as jnp
from jax import lax
from jax.experimental import pallas as pl
from jax.experimental.pallas import tpu as pltpu

ATTN_SLOPE = 0.2   # negative_slope of the attention leaky-relu
ACT_SLOPE = 0.01   # F.leaky_relu default slope (layer activation)


def _leaky(x, slope):
    # Valid for 0 < slope < 1: max(x, s*x) == x for x>=0, s*x for x<0.
    return jnp.maximum(x, slope * x)


# ----------------------------- host-side packing ------------------------------
def pack_layer(w, al, ar):
    """Pack per-head params for the fused fc matmul.

    w:  [H, Fin, Fo], al/ar: [H, 1, Fo]
    Returns:
      w_big   [Fin, H*(Fo+1) + H] : per-head blocks [w_h | 0] (the zero column
                                    becomes the "ones" column after the bias
                                    add) followed by H er columns (w_h @ ar_h).
      ones_row[1,  H*(Fo+1) + H]  : 1.0 in each head's ones-column slot.
      w_elT   [H, Fin]            : w_h @ al_h per head (row-major), used by a
                                    trans-B dot_general to emit el as [H, N].
    """
    heads, fin, fo = w.shape
    al2 = al.reshape(heads, fo)
    ar2 = ar.reshape(heads, fo)
    zero_col = jnp.zeros((fin, 1), w.dtype)
    blocks = [jnp.concatenate([w[h], zero_col], axis=1) for h in range(heads)]
    w_er = jnp.einsum('hfo,ho->fh', w, ar2)                   # [Fin, H]
    w_big = jnp.concatenate(blocks + [w_er], axis=1)          # [Fin, H*(Fo+1)+H]
    idx = jnp.arange(heads) * (fo + 1) + fo
    ones_row = jnp.zeros((1, w_big.shape[1]), w.dtype).at[0, idx].set(1.0)
    w_elT = jnp.einsum('hfo,ho->hf', w, al2)                  # [H, Fin]
    return w_big, ones_row, w_elT


# --------------------------------- the kernel ---------------------------------
def make_cgat_kernel(layer_cfgs):
    """layer_cfgs: tuple of (num_heads, out_feats) per CGATConv layer."""
    n_convs = len(layer_cfgs)

    def kernel(*refs):
        x_ref, adj_ref = refs[0], refs[1]
        param_refs = refs[2:2 + 3 * n_convs]
        out_ref = refs[2 + 3 * n_convs]
        h_scratch = refs[2 + 3 * n_convs + 1]

        h = x_ref[...]                                        # [N, Fin0]

        for l, (heads, fo) in enumerate(layer_cfgs):
            w_big = param_refs[3 * l][...]                    # [Fin, H*(Fo+1)+H]
            ones_row = param_refs[3 * l + 1][...]             # [1,  H*(Fo+1)+H]
            w_elT = param_refs[3 * l + 2][...]                # [H, Fin]

            fo1 = fo + 1
            er_base = heads * fo1

            # Fused fc: one lane-dense MXU op emits every head's
            # [feat_h | 1] block plus its er column.
            z = jnp.dot(h, w_big, preferred_element_type=jnp.float32) + ones_row
            # el for all heads as rows [H, N] (trans-B matmul over Fin).
            el_rows = lax.dot_general(w_elT, h, (((1,), (1,)), ((), ())),
                                      preferred_element_type=jnp.float32)
            el_max = jnp.max(el_rows, axis=1, keepdims=True)  # [H, 1]

            is_last = (l == n_convs - 1)
            acc = None
            for hh in range(heads):                           # static unroll (tiny H)
                feat_aug = z[:, hh * fo1:(hh + 1) * fo1]      # [N, Fo+1], last col == 1
                er_h = z[:, er_base + hh:er_base + hh + 1]    # [N, 1]
                el_h = el_rows[hh:hh + 1, :]                  # [1, N]

                # Analytic shift: leaky is monotone, so
                # max_j leaky(er_i + el_j) == leaky(er_i + max_j el_j).
                # NOTE: this max is over UNMASKED logits (shift-invariant);
                # like the previous version it assumes masked-out logits do
                # not exceed the in-row max by ~88 (f32 exp underflow).
                m = _leaky(er_h + el_max[hh:hh + 1, :], ATTN_SLOPE)   # [N, 1]
                e = _leaky(er_h + el_h, ATTN_SLOPE)                   # [N, N]

                adj = adj_ref[...]        # re-read per head: keeps live ranges bounded
                p = jnp.exp(e - m) * adj                              # [N, N]

                # rst and the softmax denominator in ONE MXU pass.
                ra = jnp.dot(p, feat_aug, preferred_element_type=jnp.float32)  # [N, Fo+1]
                denom = ra[:, fo:fo1]                                 # [N, 1]
                inv = pl.reciprocal(jnp.maximum(denom, 1e-30), approx=True)
                out_h = _leaky(ra[:, :fo] * inv, ACT_SLOPE)           # [N, Fo]

                if is_last:
                    acc = out_h if acc is None else acc + out_h
                else:
                    # torch .flatten(1) layout, written head-major into scratch.
                    h_scratch[:, hh * fo:(hh + 1) * fo] = out_h

            if is_last:
                # torch .mean(1): average over output heads.
                # TODO(synk): for large N, write into a 128-lane-padded output
                # slab and slice on the host (lane-dense store); at C=6, N=16
                # the masked store is negligible.
                out_ref[...] = acc * (1.0 / float(heads))
            else:
                h = h_scratch[:, :heads * fo]                 # next layer's input

    return kernel


def cgat_forward(params, adj, x):
    """params: list of (w [H,Fin,Fo], al [H,1,Fo], ar [H,1,Fo]); adj [N,N]; x [N,Fin0]."""
    n = x.shape[0]
    layer_cfgs = tuple((w.shape[0], w.shape[2]) for (w, _, _) in params)
    num_classes = params[-1][0].shape[2]
    hidden_widths = [h * f for (h, f) in layer_cfgs[:-1]] or [8]
    hidden_width = max(hidden_widths)

    packed = []
    for (w, al, ar) in params:
        packed.extend(pack_layer(w, al, ar))

    kernel = make_cgat_kernel(layer_cfgs)
    n_inputs = 2 + len(packed)
    vmem_spec = pl.BlockSpec(memory_space=pltpu.MemorySpace.VMEM)

    # TODO(synk): for N >~ 2k, grid over destination-row blocks (per layer) with
    # a "parallel" axis for v7x's two TensorCores and bf16 MXU operands; the
    # fully fused multi-layer form here is optimal at small N (everything stays
    # resident in VMEM, no HBM round trips between layers).
    return pl.pallas_call(
        kernel,
        out_shape=jax.ShapeDtypeStruct((n, num_classes), jnp.float32),
        in_specs=[vmem_spec for _ in range(n_inputs)],
        out_specs=vmem_spec,
        scratch_shapes=[pltpu.VMEM((n, hidden_width), jnp.float32)],
        compiler_params=pltpu.CompilerParams(
            vmem_limit_bytes=32 * 1024 * 1024),
    )(x, adj, *packed)


# ---------------------- pure-JAX reference (for checking) --------------------
def _ref_conv(x, w, al, ar, adj):
    feat = jnp.einsum('nf,hfo->hno', x, w)
    el = jnp.sum(feat * al, axis=-1)            # [H, N]
    er = jnp.sum(feat * ar, axis=-1)            # [H, N]
    e = jnp.where(er[:, :, None] + el[:, None, :] >= 0,
                  er[:, :, None] + el[:, None, :],
                  ATTN_SLOPE * (er[:, :, None] + el[:, None, :]))
    e = jnp.where(adj[None] > 0, e, -1e30)
    m = jnp.max(e, axis=2, keepdims=True)
    p = jnp.exp(e - m) * adj[None]
    a = p / jnp.maximum(jnp.sum(p, axis=2, keepdims=True), 1e-30)
    rst = jnp.einsum('hnm,hmo->hno', a, feat)
    return jnp.where(rst >= 0, rst, ACT_SLOPE * rst)


def _ref_forward(params, adj, inputs):
    n = inputs.shape[0]
    h = inputs
    for (w, al, ar) in params[:-1]:
        out = _ref_conv(h, w, al, ar, adj)
        h = jnp.transpose(out, (1, 0, 2)).reshape(n, -1)
    w, al, ar = params[-1]
    return jnp.mean(_ref_conv(h, w, al, ar, adj), axis=0)


# ----------------------------------- main ------------------------------------
if __name__ == "__main__":
    key = jax.random.PRNGKey(0)

    # model config (small, consistent with CGAT.__init__)
    N = 16                 # number of graph nodes
    in_dim = 8
    num_classes = 6
    num_hidden = 16
    num_heads = [4, 2]     # [hidden heads, output heads]
    num_layers = 2

    H, Hout = num_heads[0], num_heads[-1]

    keys = jax.random.split(key, 16)

    # node features
    x = jax.random.normal(keys[0], (N, in_dim), dtype=jnp.float32)

    # dense adjacency (adj[i, j] = 1 iff edge j -> i), with self-loops
    adj = (jax.random.uniform(keys[1], (N, N)) < 0.35).astype(jnp.float32)
    adj = jnp.maximum(adj, jnp.eye(N, dtype=jnp.float32))

    def init_layer(k, fin, fo, heads):
        k1, k2, k3 = jax.random.split(k, 3)
        scale = (2.0 / (fin + fo)) ** 0.5
        w = scale * jax.random.normal(k1, (heads, fin, fo), dtype=jnp.float32)
        al = 0.1 * jax.random.normal(k2, (heads, 1, fo), dtype=jnp.float32)
        ar = 0.1 * jax.random.normal(k3, (heads, 1, fo), dtype=jnp.float32)
        return (w, al, ar)

    params = [init_layer(keys[2], in_dim, num_hidden, H)]
    for l in range(1, num_layers):
        params.append(init_layer(keys[2 + l], num_hidden * H, num_hidden, H))
    params.append(init_layer(keys[2 + num_layers],
                             num_hidden * H, num_classes, Hout))

    logits = cgat_forward(params, adj, x)
    logits = jax.block_until_ready(logits)

    ref = jax.block_until_ready(_ref_forward(params, adj, x))

    assert logits.shape == (N, num_classes), logits.shape
    assert bool(jnp.all(jnp.isfinite(logits)))
    err = float(jnp.max(jnp.abs(logits - ref)))
    # tolerance accommodates the EUP approximate reciprocal in the softmax.
    assert err < 1e-2, f"mismatch vs reference: {err}"

    print("KERNEL_OK")
</pallas_src>

<mosaic_0001>
module attributes {stable_mosaic.version = 11 : i64} {
  func.func @kernel(%arg0: memref<16x8xf32, #tpu.memory_space<vmem>>, %arg1: memref<16x16xf32, #tpu.memory_space<vmem>>, %arg2: memref<8x72xf32, #tpu.memory_space<vmem>>, %arg3: memref<1x72xf32, #tpu.memory_space<vmem>>, %arg4: memref<4x8xf32, #tpu.memory_space<vmem>>, %arg5: memref<64x72xf32, #tpu.memory_space<vmem>>, %arg6: memref<1x72xf32, #tpu.memory_space<vmem>>, %arg7: memref<4x64xf32, #tpu.memory_space<vmem>>, %arg8: memref<64x16xf32, #tpu.memory_space<vmem>>, %arg9: memref<1x16xf32, #tpu.memory_space<vmem>>, %arg10: memref<2x64xf32, #tpu.memory_space<vmem>>, %arg11: memref<16x6xf32, #tpu.memory_space<vmem>>, %arg12: memref<16x64xf32, #tpu.memory_space<vmem>>) attributes {dimension_semantics = [], scalar_prefetch = 0 : i64, scratch_operands = 1 : i64, tpu.core_type = #tpu.core_type<tc>} {
    %c0 = arith.constant 0 : index
    %c0_0 = arith.constant 0 : index
    %0 = vector.load %arg0[%c0, %c0_0] : memref<16x8xf32, #tpu.memory_space<vmem>>, vector<16x8xf32>
    %c0_1 = arith.constant 0 : index
    %c0_2 = arith.constant 0 : index
    %1 = vector.load %arg2[%c0_1, %c0_2] : memref<8x72xf32, #tpu.memory_space<vmem>>, vector<8x72xf32>
    %c0_3 = arith.constant 0 : index
    %c0_4 = arith.constant 0 : index
    %2 = vector.load %arg3[%c0_3, %c0_4] : memref<1x72xf32, #tpu.memory_space<vmem>>, vector<1x72xf32>
    %c0_5 = arith.constant 0 : index
    %c0_6 = arith.constant 0 : index
    %3 = vector.load %arg4[%c0_5, %c0_6] : memref<4x8xf32, #tpu.memory_space<vmem>>, vector<4x8xf32>
    %cst = arith.constant dense<0.000000e+00> : vector<16x72xf32>
    %4 = tpu.matmul %0, %1, %cst {dimension_numbers = #tpu.dot_dimension_numbers<[1], [0], [0], [1], [0, 0, 1, 1], [], []>} : vector<16x8xf32>, vector<8x72xf32>, vector<16x72xf32> -> vector<16x72xf32>
    %5 = vector.broadcast %2 : vector<1x72xf32> to vector<16x72xf32>
    %6 = arith.addf %4, %5 : vector<16x72xf32>
    %cst_7 = arith.constant dense<0.000000e+00> : vector<4x16xf32>
    %7 = tpu.matmul %3, %0, %cst_7 {dimension_numbers = #tpu.dot_dimension_numbers<[1], [1], [0], [0], [0, 0, 1, 0], [], []>} : vector<4x8xf32>, vector<16x8xf32>, vector<4x16xf32> -> vector<4x16xf32>
    %cst_8 = arith.constant dense<0xFF800000> : vector<4xf32>
    %8 = vector.multi_reduction <maximumf>, %7, %cst_8 [1] : vector<4x16xf32> to vector<4xf32>
    %9 = vector.shape_cast %8 : vector<4xf32> to vector<4x1xf32>
    %10 = vector.extract_strided_slice %6 {offsets = [0, 0], sizes = [16, 17], strides = [1, 1]} : vector<16x72xf32> to vector<16x17xf32>
    %11 = vector.extract_strided_slice %6 {offsets = [0, 68], sizes = [16, 1], strides = [1, 1]} : vector<16x72xf32> to vector<16x1xf32>
    %12 = vector.extract_strided_slice %7 {offsets = [0, 0], sizes = [1, 16], strides = [1, 1]} : vector<4x16xf32> to vector<1x16xf32>
    %13 = vector.extract_strided_slice %9 {offsets = [0, 0], sizes = [1, 1], strides = [1, 1]} : vector<4x1xf32> to vector<1x1xf32>
    %14 = vector.broadcast %13 : vector<1x1xf32> to vector<16x1xf32>
    %15 = arith.addf %11, %14 : vector<16x1xf32>
    %cst_9 = arith.constant 2.000000e-01 : f32
    %16 = vector.broadcast %cst_9 : f32 to vector<16x1xf32>
    %17 = arith.mulf %16, %15 : vector<16x1xf32>
    %18 = arith.maximumf %15, %17 : vector<16x1xf32>
    %19 = vector.broadcast %11 : vector<16x1xf32> to vector<16x16xf32>
    %20 = vector.broadcast %12 : vector<1x16xf32> to vector<16x16xf32>
    %21 = arith.addf %19, %20 : vector<16x16xf32>
    %cst_10 = arith.constant 2.000000e-01 : f32
    %22 = vector.broadcast %cst_10 : f32 to vector<16x16xf32>
    %23 = arith.mulf %22, %21 : vector<16x16xf32>
    %24 = arith.maximumf %21, %23 : vector<16x16xf32>
    %c0_11 = arith.constant 0 : index
    %c0_12 = arith.constant 0 : index
    %25 = vector.load %arg1[%c0_11, %c0_12] : memref<16x16xf32, #tpu.memory_space<vmem>>, vector<16x16xf32>
    %26 = vector.broadcast %18 : vector<16x1xf32> to vector<16x16xf32>
    %27 = arith.subf %24, %26 : vector<16x16xf32>
    %28 = math.exp %27 : vector<16x16xf32>
    %29 = arith.mulf %28, %25 : vector<16x16xf32>
    %cst_13 = arith.constant dense<0.000000e+00> : vector<16x17xf32>
    %30 = tpu.matmul %29, %10, %cst_13 {dimension_numbers = #tpu.dot_dimension_numbers<[1], [0], [0], [1], [0, 0, 1, 1], [], []>} : vector<16x16xf32>, vector<16x17xf32>, vector<16x17xf32> -> vector<16x17xf32>
    %31 = vector.extract_strided_slice %30 {offsets = [0, 16], sizes = [16, 1], strides = [1, 1]} : vector<16x17xf32> to vector<16x1xf32>
    %cst_14 = arith.constant 1.000000e-30 : f32
    %32 = vector.broadcast %cst_14 : f32 to vector<16x1xf32>
    %33 = arith.maximumf %31, %32 : vector<16x1xf32>
    %34 = tpu.reciprocal %33 {approx = true} : vector<16x1xf32> -> vector<16x1xf32>
    %35 = vector.extract_strided_slice %30 {offsets = [0, 0], sizes = [16, 16], strides = [1, 1]} : vector<16x17xf32> to vector<16x16xf32>
    %36 = vector.broadcast %34 : vector<16x1xf32> to vector<16x16xf32>
    %37 = arith.mulf %35, %36 : vector<16x16xf32>
    %cst_15 = arith.constant 0.00999999977 : f32
    %38 = vector.broadcast %cst_15 : f32 to vector<16x16xf32>
    %39 = arith.mulf %38, %37 : vector<16x16xf32>
    %40 = arith.maximumf %37, %39 : vector<16x16xf32>
    %c0_16 = arith.constant 0 : index
    %c0_17 = arith.constant 0 : index
    %41 = vector.load %arg12[%c0_16, %c0_17] : memref<16x64xf32, #tpu.memory_space<vmem>>, vector<16x16xf32>
    tpu.vector_store %arg12[%c0_16, %c0_17], %40 {strides = array<i32>} : memref<16x64xf32, #tpu.memory_space<vmem>>, vector<16x16xf32>,
    %42 = vector.extract_strided_slice %6 {offsets = [0, 17], sizes = [16, 17], strides = [1, 1]} : vector<16x72xf32> to vector<16x17xf32>
    %43 = vector.extract_strided_slice %6 {offsets = [0, 69], sizes = [16, 1], strides = [1, 1]} : vector<16x72xf32> to vector<16x1xf32>
    %44 = vector.extract_strided_slice %7 {offsets = [1, 0], sizes = [1, 16], strides = [1, 1]} : vector<4x16xf32> to vector<1x16xf32>
    %45 = vector.extract_strided_slice %9 {offsets = [1, 0], sizes = [1, 1], strides = [1, 1]} : vector<4x1xf32> to vector<1x1xf32>
    %46 = vector.broadcast %45 : vector<1x1xf32> to vector<16x1xf32>
    %47 = arith.addf %43, %46 : vector<16x1xf32>
    %cst_18 = arith.constant 2.000000e-01 : f32
    %48 = vector.broadcast %cst_18 : f32 to vector<16x1xf32>
    %49 = arith.mulf %48, %47 : vector<16x1xf32>
    %50 = arith.maximumf %47, %49 : vector<16x1xf32>
    %51 = vector.broadcast %43 : vector<16x1xf32> to vector<16x16xf32>
    %52 = vector.broadcast %44 : vector<1x16xf32> to vector<16x16xf32>
    %53 = arith.addf %51, %52 : vector<16x16xf32>
    %cst_19 = arith.constant 2.000000e-01 : f32
    %54 = vector.broadcast %cst_19 : f32 to vector<16x16xf32>
    %55 = arith.mulf %54, %53 : vector<16x16xf32>
    %56 = arith.maximumf %53, %55 : vector<16x16xf32>
    %c0_20 = arith.constant 0 : index
    %c0_21 = arith.constant 0 : index
    %57 = vector.load %arg1[%c0_20, %c0_21] : memref<16x16xf32, #tpu.memory_space<vmem>>, vector<16x16xf32>
    %58 = vector.broadcast %50 : vector<16x1xf32> to vector<16x16xf32>
    %59 = arith.subf %56, %58 : vector<16x16xf32>
    %60 = math.exp %59 : vector<16x16xf32>
    %61 = arith.mulf %60, %57 : vector<16x16xf32>
    %cst_22 = arith.constant dense<0.000000e+00> : vector<16x17xf32>
    %62 = tpu.matmul %61, %42, %cst_22 {dimension_numbers = #tpu.dot_dimension_numbers<[1], [0], [0], [1], [0, 0, 1, 1], [], []>} : vector<16x16xf32>, vector<16x17xf32>, vector<16x17xf32> -> vector<16x17xf32>
    %63 = vector.extract_strided_slice %62 {offsets = [0, 16], sizes = [16, 1], strides = [1, 1]} : vector<16x17xf32> to vector<16x1xf32>
    %cst_23 = arith.constant 1.000000e-30 : f32
    %64 = vector.broadcast %cst_23 : f32 to vector<16x1xf32>
    %65 = arith.maximumf %63, %64 : vector<16x1xf32>
    %66 = tpu.reciprocal %65 {approx = true} : vector<16x1xf32> -> vector<16x1xf32>
    %67 = vector.extract_strided_slice %62 {offsets = [0, 0], sizes = [16, 16], strides = [1, 1]} : vector<16x17xf32> to vector<16x16xf32>
    %68 = vector.broadcast %66 : vector<16x1xf32> to vector<16x16xf32>
    %69 = arith.mulf %67, %68 : vector<16x16xf32>
    %cst_24 = arith.constant 0.00999999977 : f32
    %70 = vector.broadcast %cst_24 : f32 to vector<16x16xf32>
    %71 = arith.mulf %70, %69 : vector<16x16xf32>
    %72 = arith.maximumf %69, %71 : vector<16x16xf32>
    %c0_25 = arith.constant 0 : index
    %c16 = arith.constant 16 : index
    %73 = vector.load %arg12[%c0_25, %c16] : memref<16x64xf32, #tpu.memory_space<vmem>>, vector<16x16xf32>
    tpu.vector_store %arg12[%c0_25, %c16], %72 {strides = array<i32>} : memref<16x64xf32, #tpu.memory_space<vmem>>, vector<16x16xf32>,
    %74 = vector.extract_strided_slice %6 {offsets = [0, 34], sizes = [16, 17], strides = [1, 1]} : vector<16x72xf32> to vector<16x17xf32>
    %75 = vector.extract_strided_slice %6 {offsets = [0, 70], sizes = [16, 1], strides = [1, 1]} : vector<16x72xf32> to vector<16x1xf32>
    %76 = vector.extract_strided_slice %7 {offsets = [2, 0], sizes = [1, 16], strides = [1, 1]} : vector<4x16xf32> to vector<1x16xf32>
    %77 = vector.extract_strided_slice %9 {offsets = [2, 0], sizes = [1, 1], strides = [1, 1]} : vector<4x1xf32> to vector<1x1xf32>
    %78 = vector.broadcast %77 : vector<1x1xf32> to vector<16x1xf32>
    %79 = arith.addf %75, %78 : vector<16x1xf32>
    %cst_26 = arith.constant 2.000000e-01 : f32
    %80 = vector.broadcast %cst_26 : f32 to vector<16x1xf32>
    %81 = arith.mulf %80, %79 : vector<16x1xf32>
    %82 = arith.maximumf %79, %81 : vector<16x1xf32>
    %83 = vector.broadcast %75 : vector<16x1xf32> to vector<16x16xf32>
    %84 = vector.broadcast %76 : vector<1x16xf32> to vector<16x16xf32>
    %85 = arith.addf %83, %84 : vector<16x16xf32>
    %cst_27 = arith.constant 2.000000e-01 : f32
    %86 = vector.broadcast %cst_27 : f32 to vector<16x16xf32>
    %87 = arith.mulf %86, %85 : vector<16x16xf32>
    %88 = arith.maximumf %85, %87 : vector<16x16xf32>
    %c0_28 = arith.constant 0 : index
    %c0_29 = arith.constant 0 : index
    %89 = vector.load %arg1[%c0_28, %c0_29] : memref<16x16xf32, #tpu.memory_space<vmem>>, vector<16x16xf32>
    %90 = vector.broadcast %82 : vector<16x1xf32> to vector<16x16xf32>
    %91 = arith.subf %88, %90 : vector<16x16xf32>
    %92 = math.exp %91 : vector<16x16xf32>
    %93 = arith.mulf %92, %89 : vector<16x16xf32>
    %cst_30 = arith.constant dense<0.000000e+00> : vector<16x17xf32>
    %94 = tpu.matmul %93, %74, %cst_30 {dimension_numbers = #tpu.dot_dimension_numbers<[1], [0], [0], [1], [0, 0, 1, 1], [], []>} : vector<16x16xf32>, vector<16x17xf32>, vector<16x17xf32> -> vector<16x17xf32>
    %95 = vector.extract_strided_slice %94 {offsets = [0, 16], sizes = [16, 1], strides = [1, 1]} : vector<16x17xf32> to vector<16x1xf32>
    %cst_31 = arith.constant 1.000000e-30 : f32
    %96 = vector.broadcast %cst_31 : f32 to vector<16x1xf32>
    %97 = arith.maximumf %95, %96 : vector<16x1xf32>
    %98 = tpu.reciprocal %97 {approx = true} : vector<16x1xf32> -> vector<16x1xf32>
    %99 = vector.extract_strided_slice %94 {offsets = [0, 0], sizes = [16, 16], strides = [1, 1]} : vector<16x17xf32> to vector<16x16xf32>
    %100 = vector.broadcast %98 : vector<16x1xf32> to vector<16x16xf32>
    %101 = arith.mulf %99, %100 : vector<16x16xf32>
    %cst_32 = arith.constant 0.00999999977 : f32
    %102 = vector.broadcast %cst_32 : f32 to vector<16x16xf32>
    %103 = arith.mulf %102, %101 : vector<16x16xf32>
    %104 = arith.maximumf %101, %103 : vector<16x16xf32>
    %c0_33 = arith.constant 0 : index
    %c32 = arith.constant 32 : index
    %105 = vector.load %arg12[%c0_33, %c32] : memref<16x64xf32, #tpu.memory_space<vmem>>, vector<16x16xf32>
    tpu.vector_store %arg12[%c0_33, %c32], %104 {strides = array<i32>} : memref<16x64xf32, #tpu.memory_space<vmem>>, vector<16x16xf32>,
    %106 = vector.extract_strided_slice %6 {offsets = [0, 51], sizes = [16, 17], strides = [1, 1]} : vector<16x72xf32> to vector<16x17xf32>
    %107 = vector.extract_strided_slice %6 {offsets = [0, 71], sizes = [16, 1], strides = [1, 1]} : vector<16x72xf32> to vector<16x1xf32>
    %108 = vector.extract_strided_slice %7 {offsets = [3, 0], sizes = [1, 16], strides = [1, 1]} : vector<4x16xf32> to vector<1x16xf32>
    %109 = vector.extract_strided_slice %9 {offsets = [3, 0], sizes = [1, 1], strides = [1, 1]} : vector<4x1xf32> to vector<1x1xf32>
    %110 = vector.broadcast %109 : vector<1x1xf32> to vector<16x1xf32>
    %111 = arith.addf %107, %110 : vector<16x1xf32>
    %cst_34 = arith.constant 2.000000e-01 : f32
    %112 = vector.broadcast %cst_34 : f32 to vector<16x1xf32>
    %113 = arith.mulf %112, %111 : vector<16x1xf32>
    %114 = arith.maximumf %111, %113 : vector<16x1xf32>
    %115 = vector.broadcast %107 : vector<16x1xf32> to vector<16x16xf32>
    %116 = vector.broadcast %108 : vector<1x16xf32> to vector<16x16xf32>
    %117 = arith.addf %115, %116 : vector<16x16xf32>
    %cst_35 = arith.constant 2.000000e-01 : f32
    %118 = vector.broadcast %cst_35 : f32 to vector<16x16xf32>
    %119 = arith.mulf %118, %117 : vector<16x16xf32>
    %120 = arith.maximumf %117, %119 : vector<16x16xf32>
    %c0_36 = arith.constant 0 : index
    %c0_37 = arith.constant 0 : index
    %121 = vector.load %arg1[%c0_36, %c0_37] : memref<16x16xf32, #tpu.memory_space<vmem>>, vector<16x16xf32>
    %122 = vector.broadcast %114 : vector<16x1xf32> to vector<16x16xf32>
    %123 = arith.subf %120, %122 : vector<16x16xf32>
    %124 = math.exp %123 : vector<16x16xf32>
    %125 = arith.mulf %124, %121 : vector<16x16xf32>
    %cst_38 = arith.constant dense<0.000000e+00> : vector<16x17xf32>
    %126 = tpu.matmul %125, %106, %cst_38 {dimension_numbers = #tpu.dot_dimension_numbers<[1], [0], [0], [1], [0, 0, 1, 1], [], []>} : vector<16x16xf32>, vector<16x17xf32>, vector<16x17xf32> -> vector<16x17xf32>
    %127 = vector.extract_strided_slice %126 {offsets = [0, 16], sizes = [16, 1], strides = [1, 1]} : vector<16x17xf32> to vector<16x1xf32>
    %cst_39 = arith.constant 1.000000e-30 : f32
    %128 = vector.broadcast %cst_39 : f32 to vector<16x1xf32>
    %129 = arith.maximumf %127, %128 : vector<16x1xf32>
    %130 = tpu.reciprocal %129 {approx = true} : vector<16x1xf32> -> vector<16x1xf32>
    %131 = vector.extract_strided_slice %126 {offsets = [0, 0], sizes = [16, 16], strides = [1, 1]} : vector<16x17xf32> to vector<16x16xf32>
    %132 = vector.broadcast %130 : vector<16x1xf32> to vector<16x16xf32>
    %133 = arith.mulf %131, %132 : vector<16x16xf32>
    %cst_40 = arith.constant 0.00999999977 : f32
    %134 = vector.broadcast %cst_40 : f32 to vector<16x16xf32>
    %135 = arith.mulf %134, %133 : vector<16x16xf32>
    %136 = arith.maximumf %133, %135 : vector<16x16xf32>
    %c0_41 = arith.constant 0 : index
    %c48 = arith.constant 48 : index
    %137 = vector.load %arg12[%c0_41, %c48] : memref<16x64xf32, #tpu.memory_space<vmem>>, vector<16x16xf32>
    tpu.vector_store %arg12[%c0_41, %c48], %136 {strides = array<i32>} : memref<16x64xf32, #tpu.memory_space<vmem>>, vector<16x16xf32>,
    %c0_42 = arith.constant 0 : index
    %c0_43 = arith.constant 0 : index
    %138 = vector.load %arg12[%c0_42, %c0_43] : memref<16x64xf32, #tpu.memory_space<vmem>>, vector<16x64xf32>
    %c0_44 = arith.constant 0 : index
    %c0_45 = arith.constant 0 : index
    %139 = vector.load %arg5[%c0_44, %c0_45] : memref<64x72xf32, #tpu.memory_space<vmem>>, vector<64x72xf32>
    %c0_46 = arith.constant 0 : index
    %c0_47 = arith.constant 0 : index
    %140 = vector.load %arg6[%c0_46, %c0_47] : memref<1x72xf32, #tpu.memory_space<vmem>>, vector<1x72xf32>
    %c0_48 = arith.constant 0 : index
    %c0_49 = arith.constant 0 : index
    %141 = vector.load %arg7[%c0_48, %c0_49] : memref<4x64xf32, #tpu.memory_space<vmem>>, vector<4x64xf32>
    %cst_50 = arith.constant dense<0.000000e+00> : vector<16x72xf32>
    %142 = tpu.matmul %138, %139, %cst_50 {dimension_numbers = #tpu.dot_dimension_numbers<[1], [0], [0], [1], [0, 0, 1, 1], [], []>} : vector<16x64xf32>, vector<64x72xf32>, vector<16x72xf32> -> vector<16x72xf32>
    %143 = vector.broadcast %140 : vector<1x72xf32> to vector<16x72xf32>
    %144 = arith.addf %142, %143 : vector<16x72xf32>
    %cst_51 = arith.constant dense<0.000000e+00> : vector<4x16xf32>
    %145 = tpu.matmul %141, %138, %cst_51 {dimension_numbers = #tpu.dot_dimension_numbers<[1], [1], [0], [0], [0, 0, 1, 0], [], []>} : vector<4x64xf32>, vector<16x64xf32>, vector<4x16xf32> -> vector<4x16xf32>
    %cst_52 = arith.constant dense<0xFF800000> : vector<4xf32>
    %146 = vector.multi_reduction <maximumf>, %145, %cst_52 [1] : vector<4x16xf32> to vector<4xf32>
    %147 = vector.shape_cast %146 : vector<4xf32> to vector<4x1xf32>
    %148 = vector.extract_strided_slice %144 {offsets = [0, 0], sizes = [16, 17], strides = [1, 1]} : vector<16x72xf32> to vector<16x17xf32>
    %149 = vector.extract_strided_slice %144 {offsets = [0, 68], sizes = [16, 1], strides = [1, 1]} : vector<16x72xf32> to vector<16x1xf32>
    %150 = vector.extract_strided_slice %145 {offsets = [0, 0], sizes = [1, 16], strides = [1, 1]} : vector<4x16xf32> to vector<1x16xf32>
    %151 = vector.extract_strided_slice %147 {offsets = [0, 0], sizes = [1, 1], strides = [1, 1]} : vector<4x1xf32> to vector<1x1xf32>
    %152 = vector.broadcast %151 : vector<1x1xf32> to vector<16x1xf32>
    %153 = arith.addf %149, %152 : vector<16x1xf32>
    %cst_53 = arith.constant 2.000000e-01 : f32
    %154 = vector.broadcast %cst_53 : f32 to vector<16x1xf32>
    %155 = arith.mulf %154, %153 : vector<16x1xf32>
    %156 = arith.maximumf %153, %155 : vector<16x1xf32>
    %157 = vector.broadcast %149 : vector<16x1xf32> to vector<16x16xf32>
    %158 = vector.broadcast %150 : vector<1x16xf32> to vector<16x16xf32>
    %159 = arith.addf %157, %158 : vector<16x16xf32>
    %cst_54 = arith.constant 2.000000e-01 : f32
    %160 = vector.broadcast %cst_54 : f32 to vector<16x16xf32>
    %161 = arith.mulf %160, %159 : vector<16x16xf32>
    %162 = arith.maximumf %159, %161 : vector<16x16xf32>
    %c0_55 = arith.constant 0 : index
    %c0_56 = arith.constant 0 : index
    %163 = vector.load %arg1[%c0_55, %c0_56] : memref<16x16xf32, #tpu.memory_space<vmem>>, vector<16x16xf32>
    %164 = vector.broadcast %156 : vector<16x1xf32> to vector<16x16xf32>
    %165 = arith.subf %162, %164 : vector<16x16xf32>
    %166 = math.exp %165 : vector<16x16xf32>
    %167 = arith.mulf %166, %163 : vector<16x16xf32>
    %cst_57 = arith.constant dense<0.000000e+00> : vector<16x17xf32>
    %168 = tpu.matmul %167, %148, %cst_57 {dimension_numbers = #tpu.dot_dimension_numbers<[1], [0], [0], [1], [0, 0, 1, 1], [], []>} : vector<16x16xf32>, vector<16x17xf32>, vector<16x17xf32> -> vector<16x17xf32>
    %169 = vector.extract_strided_slice %168 {offsets = [0, 16], sizes = [16, 1], strides = [1, 1]} : vector<16x17xf32> to vector<16x1xf32>
    %cst_58 = arith.constant 1.000000e-30 : f32
    %170 = vector.broadcast %cst_58 : f32 to vector<16x1xf32>
    %171 = arith.maximumf %169, %170 : vector<16x1xf32>
    %172 = tpu.reciprocal %171 {approx = true} : vector<16x1xf32> -> vector<16x1xf32>
    %173 = vector.extract_strided_slice %168 {offsets = [0, 0], sizes = [16, 16], strides = [1, 1]} : vector<16x17xf32> to vector<16x16xf32>
    %174 = vector.broadcast %172 : vector<16x1xf32> to vector<16x16xf32>
    %175 = arith.mulf %173, %174 : vector<16x16xf32>
    %cst_59 = arith.constant 0.00999999977 : f32
    %176 = vector.broadcast %cst_59 : f32 to vector<16x16xf32>
    %177 = arith.mulf %176, %175 : vector<16x16xf32>
    %178 = arith.maximumf %175, %177 : vector<16x16xf32>
    %c0_60 = arith.constant 0 : index
    %c0_61 = arith.constant 0 : index
    %179 = vector.load %arg12[%c0_60, %c0_61] : memref<16x64xf32, #tpu.memory_space<vmem>>, vector<16x16xf32>
    tpu.vector_store %arg12[%c0_60, %c0_61], %178 {strides = array<i32>} : memref<16x64xf32, #tpu.memory_space<vmem>>, vector<16x16xf32>,
    %180 = vector.extract_strided_slice %144 {offsets = [0, 17], sizes = [16, 17], strides = [1, 1]} : vector<16x72xf32> to vector<16x17xf32>
    %181 = vector.extract_strided_slice %144 {offsets = [0, 69], sizes = [16, 1], strides = [1, 1]} : vector<16x72xf32> to vector<16x1xf32>
    %182 = vector.extract_strided_slice %145 {offsets = [1, 0], sizes = [1, 16], strides = [1, 1]} : vector<4x16xf32> to vector<1x16xf32>
    %183 = vector.extract_strided_slice %147 {offsets = [1, 0], sizes = [1, 1], strides = [1, 1]} : vector<4x1xf32> to vector<1x1xf32>
    %184 = vector.broadcast %183 : vector<1x1xf32> to vector<16x1xf32>
    %185 = arith.addf %181, %184 : vector<16x1xf32>
    %cst_62 = arith.constant 2.000000e-01 : f32
    %186 = vector.broadcast %cst_62 : f32 to vector<16x1xf32>
    %187 = arith.mulf %186, %185 : vector<16x1xf32>
    %188 = arith.maximumf %185, %187 : vector<16x1xf32>
    %189 = vector.broadcast %181 : vector<16x1xf32> to vector<16x16xf32>
    %190 = vector.broadcast %182 : vector<1x16xf32> to vector<16x16xf32>
    %191 = arith.addf %189, %190 : vector<16x16xf32>
    %cst_63 = arith.constant 2.000000e-01 : f32
    %192 = vector.broadcast %cst_63 : f32 to vector<16x16xf32>
    %193 = arith.mulf %192, %191 : vector<16x16xf32>
    %194 = arith.maximumf %191, %193 : vector<16x16xf32>
    %c0_64 = arith.constant 0 : index
    %c0_65 = arith.constant 0 : index
    %195 = vector.load %arg1[%c0_64, %c0_65] : memref<16x16xf32, #tpu.memory_space<vmem>>, vector<16x16xf32>
    %196 = vector.broadcast %188 : vector<16x1xf32> to vector<16x16xf32>
    %197 = arith.subf %194, %196 : vector<16x16xf32>
    %198 = math.exp %197 : vector<16x16xf32>
    %199 = arith.mulf %198, %195 : vector<16x16xf32>
    %cst_66 = arith.constant dense<0.000000e+00> : vector<16x17xf32>
    %200 = tpu.matmul %199, %180, %cst_66 {dimension_numbers = #tpu.dot_dimension_numbers<[1], [0], [0], [1], [0, 0, 1, 1], [], []>} : vector<16x16xf32>, vector<16x17xf32>, vector<16x17xf32> -> vector<16x17xf32>
    %201 = vector.extract_strided_slice %200 {offsets = [0, 16], sizes = [16, 1], strides = [1, 1]} : vector<16x17xf32> to vector<16x1xf32>
    %cst_67 = arith.constant 1.000000e-30 : f32
    %202 = vector.broadcast %cst_67 : f32 to vector<16x1xf32>
    %203 = arith.maximumf %201, %202 : vector<16x1xf32>
    %204 = tpu.reciprocal %203 {approx = true} : vector<16x1xf32> -> vector<16x1xf32>
    %205 = vector.extract_strided_slice %200 {offsets = [0, 0], sizes = [16, 16], strides = [1, 1]} : vector<16x17xf32> to vector<16x16xf32>
    %206 = vector.broadcast %204 : vector<16x1xf32> to vector<16x16xf32>
    %207 = arith.mulf %205, %206 : vector<16x16xf32>
    %cst_68 = arith.constant 0.00999999977 : f32
    %208 = vector.broadcast %cst_68 : f32 to vector<16x16xf32>
    %209 = arith.mulf %208, %207 : vector<16x16xf32>
    %210 = arith.maximumf %207, %209 : vector<16x16xf32>
    %c0_69 = arith.constant 0 : index
    %c16_70 = arith.constant 16 : index
    %211 = vector.load %arg12[%c0_69, %c16_70] : memref<16x64xf32, #tpu.memory_space<vmem>>, vector<16x16xf32>
    tpu.vector_store %arg12[%c0_69, %c16_70], %210 {strides = array<i32>} : memref<16x64xf32, #tpu.memory_space<vmem>>, vector<16x16xf32>,
    %212 = vector.extract_strided_slice %144 {offsets = [0, 34], sizes = [16, 17], strides = [1, 1]} : vector<16x72xf32> to vector<16x17xf32>
    %213 = vector.extract_strided_slice %144 {offsets = [0, 70], sizes = [16, 1], strides = [1, 1]} : vector<16x72xf32> to vector<16x1xf32>
    %214 = vector.extract_strided_slice %145 {offsets = [2, 0], sizes = [1, 16], strides = [1, 1]} : vector<4x16xf32> to vector<1x16xf32>
    %215 = vector.extract_strided_slice %147 {offsets = [2, 0], sizes = [1, 1], strides = [1, 1]} : vector<4x1xf32> to vector<1x1xf32>
    %216 = vector.broadcast %215 : vector<1x1xf32> to vector<16x1xf32>
    %217 = arith.addf %213, %216 : vector<16x1xf32>
    %cst_71 = arith.constant 2.000000e-01 : f32
    %218 = vector.broadcast %cst_71 : f32 to vector<16x1xf32>
    %219 = arith.mulf %218, %217 : vector<16x1xf32>
    %220 = arith.maximumf %217, %219 : vector<16x1xf32>
    %221 = vector.broadcast %213 : vector<16x1xf32> to vector<16x16xf32>
    %222 = vector.broadcast %214 : vector<1x16xf32> to vector<16x16xf32>
    %223 = arith.addf %221, %222 : vector<16x16xf32>
    %cst_72 = arith.constant 2.000000e-01 : f32
    %224 = vector.broadcast %cst_72 : f32 to vector<16x16xf32>
    %225 = arith.mulf %224, %223 : vector<16x16xf32>
    %226 = arith.maximumf %223, %225 : vector<16x16xf32>
    %c0_73 = arith.constant 0 : index
    %c0_74 = arith.constant 0 : index
    %227 = vector.load %arg1[%c0_73, %c0_74] : memref<16x16xf32, #tpu.memory_space<vmem>>, vector<16x16xf32>
    %228 = vector.broadcast %220 : vector<16x1xf32> to vector<16x16xf32>
    %229 = arith.subf %226, %228 : vector<16x16xf32>
    %230 = math.exp %229 : vector<16x16xf32>
    %231 = arith.mulf %230, %227 : vector<16x16xf32>
    %cst_75 = arith.constant dense<0.000000e+00> : vector<16x17xf32>
    %232 = tpu.matmul %231, %212, %cst_75 {dimension_numbers = #tpu.dot_dimension_numbers<[1], [0], [0], [1], [0, 0, 1, 1], [], []>} : vector<16x16xf32>, vector<16x17xf32>, vector<16x17xf32> -> vector<16x17xf32>
    %233 = vector.extract_strided_slice %232 {offsets = [0, 16], sizes = [16, 1], strides = [1, 1]} : vector<16x17xf32> to vector<16x1xf32>
    %cst_76 = arith.constant 1.000000e-30 : f32
    %234 = vector.broadcast %cst_76 : f32 to vector<16x1xf32>
    %235 = arith.maximumf %233, %234 : vector<16x1xf32>
    %236 = tpu.reciprocal %235 {approx = true} : vector<16x1xf32> -> vector<16x1xf32>
    %237 = vector.extract_strided_slice %232 {offsets = [0, 0], sizes = [16, 16], strides = [1, 1]} : vector<16x17xf32> to vector<16x16xf32>
    %238 = vector.broadcast %236 : vector<16x1xf32> to vector<16x16xf32>
    %239 = arith.mulf %237, %238 : vector<16x16xf32>
    %cst_77 = arith.constant 0.00999999977 : f32
    %240 = vector.broadcast %cst_77 : f32 to vector<16x16xf32>
    %241 = arith.mulf %240, %239 : vector<16x16xf32>
    %242 = arith.maximumf %239, %241 : vector<16x16xf32>
    %c0_78 = arith.constant 0 : index
    %c32_79 = arith.constant 32 : index
    %243 = vector.load %arg12[%c0_78, %c32_79] : memref<16x64xf32, #tpu.memory_space<vmem>>, vector<16x16xf32>
    tpu.vector_store %arg12[%c0_78, %c32_79], %242 {strides = array<i32>} : memref<16x64xf32, #tpu.memory_space<vmem>>, vector<16x16xf32>,
    %244 = vector.extract_strided_slice %144 {offsets = [0, 51], sizes = [16, 17], strides = [1, 1]} : vector<16x72xf32> to vector<16x17xf32>
    %245 = vector.extract_strided_slice %144 {offsets = [0, 71], sizes = [16, 1], strides = [1, 1]} : vector<16x72xf32> to vector<16x1xf32>
    %246 = vector.extract_strided_slice %145 {offsets = [3, 0], sizes = [1, 16], strides = [1, 1]} : vector<4x16xf32> to vector<1x16xf32>
    %247 = vector.extract_strided_slice %147 {offsets = [3, 0], sizes = [1, 1], strides = [1, 1]} : vector<4x1xf32> to vector<1x1xf32>
    %248 = vector.broadcast %247 : vector<1x1xf32> to vector<16x1xf32>
    %249 = arith.addf %245, %248 : vector<16x1xf32>
    %cst_80 = arith.constant 2.000000e-01 : f32
    %250 = vector.broadcast %cst_80 : f32 to vector<16x1xf32>
    %251 = arith.mulf %250, %249 : vector<16x1xf32>
    %252 = arith.maximumf %249, %251 : vector<16x1xf32>
    %253 = vector.broadcast %245 : vector<16x1xf32> to vector<16x16xf32>
    %254 = vector.broadcast %246 : vector<1x16xf32> to vector<16x16xf32>
    %255 = arith.addf %253, %254 : vector<16x16xf32>
    %cst_81 = arith.constant 2.000000e-01 : f32
    %256 = vector.broadcast %cst_81 : f32 to vector<16x16xf32>
    %257 = arith.mulf %256, %255 : vector<16x16xf32>
    %258 = arith.maximumf %255, %257 : vector<16x16xf32>
    %c0_82 = arith.constant 0 : index
    %c0_83 = arith.constant 0 : index
    %259 = vector.load %arg1[%c0_82, %c0_83] : memref<16x16xf32, #tpu.memory_space<vmem>>, vector<16x16xf32>
    %260 = vector.broadcast %252 : vector<16x1xf32> to vector<16x16xf32>
    %261 = arith.subf %258, %260 : vector<16x16xf32>
    %262 = math.exp %261 : vector<16x16xf32>
    %263 = arith.mulf %262, %259 : vector<16x16xf32>
    %cst_84 = arith.constant dense<0.000000e+00> : vector<16x17xf32>
    %264 = tpu.matmul %263, %244, %cst_84 {dimension_numbers = #tpu.dot_dimension_numbers<[1], [0], [0], [1], [0, 0, 1, 1], [], []>} : vector<16x16xf32>, vector<16x17xf32>, vector<16x17xf32> -> vector<16x17xf32>
    %265 = vector.extract_strided_slice %264 {offsets = [0, 16], sizes = [16, 1], strides = [1, 1]} : vector<16x17xf32> to vector<16x1xf32>
    %cst_85 = arith.constant 1.000000e-30 : f32
    %266 = vector.broadcast %cst_85 : f32 to vector<16x1xf32>
    %267 = arith.maximumf %265, %266 : vector<16x1xf32>
    %268 = tpu.reciprocal %267 {approx = true} : vector<16x1xf32> -> vector<16x1xf32>
    %269 = vector.extract_strided_slice %264 {offsets = [0, 0], sizes = [16, 16], strides = [1, 1]} : vector<16x17xf32> to vector<16x16xf32>
    %270 = vector.broadcast %268 : vector<16x1xf32> to vector<16x16xf32>
    %271 = arith.mulf %269, %270 : vector<16x16xf32>
    %cst_86 = arith.constant 0.00999999977 : f32
    %272 = vector.broadcast %cst_86 : f32 to vector<16x16xf32>
    %273 = arith.mulf %272, %271 : vector<16x16xf32>
    %274 = arith.maximumf %271, %273 : vector<16x16xf32>
    %c0_87 = arith.constant 0 : index
    %c48_88 = arith.constant 48 : index
    %275 = vector.load %arg12[%c0_87, %c48_88] : memref<16x64xf32, #tpu.memory_space<vmem>>, vector<16x16xf32>
    tpu.vector_store %arg12[%c0_87, %c48_88], %274 {strides = array<i32>} : memref<16x64xf32, #tpu.memory_space<vmem>>, vector<16x16xf32>,
    %c0_89 = arith.constant 0 : index
    %c0_90 = arith.constant 0 : index
    %276 = vector.load %arg12[%c0_89, %c0_90] : memref<16x64xf32, #tpu.memory_space<vmem>>, vector<16x64xf32>
    %c0_91 = arith.constant 0 : index
    %c0_92 = arith.constant 0 : index
    %277 = vector.load %arg8[%c0_91, %c0_92] : memref<64x16xf32, #tpu.memory_space<vmem>>, vector<64x16xf32>
    %c0_93 = arith.constant 0 : index
    %c0_94 = arith.constant 0 : index
    %278 = vector.load %arg9[%c0_93, %c0_94] : memref<1x16xf32, #tpu.memory_space<vmem>>, vector<1x16xf32>
    %c0_95 = arith.constant 0 : index
    %c0_96 = arith.constant 0 : index
    %279 = vector.load %arg10[%c0_95, %c0_96] : memref<2x64xf32, #tpu.memory_space<vmem>>, vector<2x64xf32>
    %cst_97 = arith.constant dense<0.000000e+00> : vector<16x16xf32>
    %280 = tpu.matmul %276, %277, %cst_97 {dimension_numbers = #tpu.dot_dimension_numbers<[1], [0], [0], [1], [0, 0, 1, 1], [], []>} : vector<16x64xf32>, vector<64x16xf32>, vector<16x16xf32> -> vector<16x16xf32>
    %281 = vector.broadcast %278 : vector<1x16xf32> to vector<16x16xf32>
    %282 = arith.addf %280, %281 : vector<16x16xf32>
    %cst_98 = arith.constant dense<0.000000e+00> : vector<2x16xf32>
    %283 = tpu.matmul %279, %276, %cst_98 {dimension_numbers = #tpu.dot_dimension_numbers<[1], [1], [0], [0], [0, 0, 1, 0], [], []>} : vector<2x64xf32>, vector<16x64xf32>, vector<2x16xf32> -> vector<2x16xf32>
    %cst_99 = arith.constant dense<0xFF800000> : vector<2xf32>
    %284 = vector.multi_reduction <maximumf>, %283, %cst_99 [1] : vector<2x16xf32> to vector<2xf32>
    %285 = vector.shape_cast %284 : vector<2xf32> to vector<2x1xf32>
    %286 = vector.extract_strided_slice %282 {offsets = [0, 0], sizes = [16, 7], strides = [1, 1]} : vector<16x16xf32> to vector<16x7xf32>
    %287 = vector.extract_strided_slice %282 {offsets = [0, 14], sizes = [16, 1], strides = [1, 1]} : vector<16x16xf32> to vector<16x1xf32>
    %288 = vector.extract_strided_slice %283 {offsets = [0, 0], sizes = [1, 16], strides = [1, 1]} : vector<2x16xf32> to vector<1x16xf32>
    %289 = vector.extract_strided_slice %285 {offsets = [0, 0], sizes = [1, 1], strides = [1, 1]} : vector<2x1xf32> to vector<1x1xf32>
    %290 = vector.broadcast %289 : vector<1x1xf32> to vector<16x1xf32>
    %291 = arith.addf %287, %290 : vector<16x1xf32>
    %cst_100 = arith.constant 2.000000e-01 : f32
    %292 = vector.broadcast %cst_100 : f32 to vector<16x1xf32>
    %293 = arith.mulf %292, %291 : vector<16x1xf32>
    %294 = arith.maximumf %291, %293 : vector<16x1xf32>
    %295 = vector.broadcast %287 : vector<16x1xf32> to vector<16x16xf32>
    %296 = vector.broadcast %288 : vector<1x16xf32> to vector<16x16xf32>
    %297 = arith.addf %295, %296 : vector<16x16xf32>
    %cst_101 = arith.constant 2.000000e-01 : f32
    %298 = vector.broadcast %cst_101 : f32 to vector<16x16xf32>
    %299 = arith.mulf %298, %297 : vector<16x16xf32>
    %300 = arith.maximumf %297, %299 : vector<16x16xf32>
    %c0_102 = arith.constant 0 : index
    %c0_103 = arith.constant 0 : index
    %301 = vector.load %arg1[%c0_102, %c0_103] : memref<16x16xf32, #tpu.memory_space<vmem>>, vector<16x16xf32>
    %302 = vector.broadcast %294 : vector<16x1xf32> to vector<16x16xf32>
    %303 = arith.subf %300, %302 : vector<16x16xf32>
    %304 = math.exp %303 : vector<16x16xf32>
    %305 = arith.mulf %304, %301 : vector<16x16xf32>
    %cst_104 = arith.constant dense<0.000000e+00> : vector<16x7xf32>
    %306 = tpu.matmul %305, %286, %cst_104 {dimension_numbers = #tpu.dot_dimension_numbers<[1], [0], [0], [1], [0, 0, 1, 1], [], []>} : vector<16x16xf32>, vector<16x7xf32>, vector<16x7xf32> -> vector<16x7xf32>
    %307 = vector.extract_strided_slice %306 {offsets = [0, 6], sizes = [16, 1], strides = [1, 1]} : vector<16x7xf32> to vector<16x1xf32>
    %cst_105 = arith.constant 1.000000e-30 : f32
    %308 = vector.broadcast %cst_105 : f32 to vector<16x1xf32>
    %309 = arith.maximumf %307, %308 : vector<16x1xf32>
    %310 = tpu.reciprocal %309 {approx = true} : vector<16x1xf32> -> vector<16x1xf32>
    %311 = vector.extract_strided_slice %306 {offsets = [0, 0], sizes = [16, 6], strides = [1, 1]} : vector<16x7xf32> to vector<16x6xf32>
    %312 = vector.broadcast %310 : vector<16x1xf32> to vector<16x6xf32>
    %313 = arith.mulf %311, %312 : vector<16x6xf32>
    %cst_106 = arith.constant 0.00999999977 : f32
    %314 = vector.broadcast %cst_106 : f32 to vector<16x6xf32>
    %315 = arith.mulf %314, %313 : vector<16x6xf32>
    %316 = arith.maximumf %313, %315 : vector<16x6xf32>
    %317 = vector.extract_strided_slice %282 {offsets = [0, 7], sizes = [16, 7], strides = [1, 1]} : vector<16x16xf32> to vector<16x7xf32>
    %318 = vector.extract_strided_slice %282 {offsets = [0, 15], sizes = [16, 1], strides = [1, 1]} : vector<16x16xf32> to vector<16x1xf32>
    %319 = vector.extract_strided_slice %283 {offsets = [1, 0], sizes = [1, 16], strides = [1, 1]} : vector<2x16xf32> to vector<1x16xf32>
    %320 = vector.extract_strided_slice %285 {offsets = [1, 0], sizes = [1, 1], strides = [1, 1]} : vector<2x1xf32> to vector<1x1xf32>
    %321 = vector.broadcast %320 : vector<1x1xf32> to vector<16x1xf32>
    %322 = arith.addf %318, %321 : vector<16x1xf32>
    %cst_107 = arith.constant 2.000000e-01 : f32
    %323 = vector.broadcast %cst_107 : f32 to vector<16x1xf32>
    %324 = arith.mulf %323, %322 : vector<16x1xf32>
    %325 = arith.maximumf %322, %324 : vector<16x1xf32>
    %326 = vector.broadcast %318 : vector<16x1xf32> to vector<16x16xf32>
    %327 = vector.broadcast %319 : vector<1x16xf32> to vector<16x16xf32>
    %328 = arith.addf %326, %327 : vector<16x16xf32>
    %cst_108 = arith.constant 2.000000e-01 : f32
    %329 = vector.broadcast %cst_108 : f32 to vector<16x16xf32>
    %330 = arith.mulf %329, %328 : vector<16x16xf32>
    %331 = arith.maximumf %328, %330 : vector<16x16xf32>
    %c0_109 = arith.constant 0 : index
    %c0_110 = arith.constant 0 : index
    %332 = vector.load %arg1[%c0_109, %c0_110] : memref<16x16xf32, #tpu.memory_space<vmem>>, vector<16x16xf32>
    %333 = vector.broadcast %325 : vector<16x1xf32> to vector<16x16xf32>
    %334 = arith.subf %331, %333 : vector<16x16xf32>
    %335 = math.exp %334 : vector<16x16xf32>
    %336 = arith.mulf %335, %332 : vector<16x16xf32>
    %cst_111 = arith.constant dense<0.000000e+00> : vector<16x7xf32>
    %337 = tpu.matmul %336, %317, %cst_111 {dimension_numbers = #tpu.dot_dimension_numbers<[1], [0], [0], [1], [0, 0, 1, 1], [], []>} : vector<16x16xf32>, vector<16x7xf32>, vector<16x7xf32> -> vector<16x7xf32>
    %338 = vector.extract_strided_slice %337 {offsets = [0, 6], sizes = [16, 1], strides = [1, 1]} : vector<16x7xf32> to vector<16x1xf32>
    %cst_112 = arith.constant 1.000000e-30 : f32
    %339 = vector.broadcast %cst_112 : f32 to vector<16x1xf32>
    %340 = arith.maximumf %338, %339 : vector<16x1xf32>
    %341 = tpu.reciprocal %340 {approx = true} : vector<16x1xf32> -> vector<16x1xf32>
    %342 = vector.extract_strided_slice %337 {offsets = [0, 0], sizes = [16, 6], strides = [1, 1]} : vector<16x7xf32> to vector<16x6xf32>
    %343 = vector.broadcast %341 : vector<16x1xf32> to vector<16x6xf32>
    %344 = arith.mulf %342, %343 : vector<16x6xf32>
    %cst_113 = arith.constant 0.00999999977 : f32
    %345 = vector.broadcast %cst_113 : f32 to vector<16x6xf32>
    %346 = arith.mulf %345, %344 : vector<16x6xf32>
    %347 = arith.maximumf %344, %346 : vector<16x6xf32>
    %348 = arith.addf %316, %347 : vector<16x6xf32>
    %cst_114 = arith.constant 5.000000e-01 : f32
    %349 = vector.broadcast %cst_114 : f32 to vector<16x6xf32>
    %350 = arith.mulf %348, %349 : vector<16x6xf32>
    %c0_115 = arith.constant 0 : index
    %c0_116 = arith.constant 0 : index
    %351 = vector.load %arg11[%c0_115, %c0_116] : memref<16x6xf32, #tpu.memory_space<vmem>>, vector<16x6xf32>
    tpu.vector_store %arg11[%c0_115, %c0_116], %350 {strides = array<i32>} : memref<16x6xf32, #tpu.memory_space<vmem>>, vector<16x6xf32>,
    return
  }
}

</mosaic_0001>

<llo_original>
// kernel: tpu_custom_call.1
$region0: #{tpu_custom_call.1}
  #allocation0 [shape = 'u32[]', space=smem, size = 0x4, offset = 0x4, fixed_abs, tag = 'smem constant byte address 0x4 - core index']
  #allocation1 [shape = 'u32[144,128]{1,0:T(1,128)}', space=vmem, size = 0x12000, scoped, tag = 'internal scratch']
  #allocation2 [shape = 'f32[16,64]{1,0:T(8,128)}', space=vmem, size = 0x2000, scoped, tag = 'scratch operand']
  %s0 = inlined_call_operand.vmem [shape: f32[16,8], index: 0, kind: input, shape index: {}]
  %s1 = inlined_call_operand.vmem [shape: f32[16,16], index: 1, kind: input, shape index: {}]
  %s2 = inlined_call_operand.vmem [shape: f32[8,72], index: 2, kind: input, shape index: {}]
  %s3 = inlined_call_operand.vmem [shape: f32[1,72], index: 3, kind: input, shape index: {}]
  %s4 = inlined_call_operand.vmem [shape: f32[4,8], index: 4, kind: input, shape index: {}]
  %s5 = inlined_call_operand.vmem [shape: f32[64,72], index: 5, kind: input, shape index: {}]
  %s6 = inlined_call_operand.vmem [shape: f32[1,72], index: 6, kind: input, shape index: {}]
  %s7 = inlined_call_operand.vmem [shape: f32[4,64], index: 7, kind: input, shape index: {}]
  %s8 = inlined_call_operand.vmem [shape: f32[64,16], index: 8, kind: input, shape index: {}]
  %s9 = inlined_call_operand.vmem [shape: f32[1,16], index: 9, kind: input, shape index: {}]
  %s10 = inlined_call_operand.vmem [shape: f32[2,64], index: 10, kind: input, shape index: {}]
  %s11 = inlined_call_operand.vmem [shape: f32[16,6], index: 11, kind: output, shape index: {}]
  %s12 = sld [smem:[#allocation0]]
  $region54: #{tpu_custom_call.1} parent=0
    _
  %s14 = ssub.s32 1, %s12
  %s15 = scalar_select 0, %s14, %s12
  // Predicated region
  $region2: #{tpu_custom_call.1} parent=0 // pred_check
    _
  $region3: #{tpu_custom_call.1} parent=0 // pred_check_branch
    %17 = sbr.rel (0) target = $region5
  $region4: #{tpu_custom_call.1} parent=0 // pred_region
    _
  $region5: #{tpu_custom_call.1} parent=0 // pred_fallthru
    _
  // Predicated region
  $region6: #{tpu_custom_call.1} parent=0 // pred_check
    _
  $region7: #{tpu_custom_call.1} parent=0 // pred_check_branch
    %19 = sbr.rel (0) target = $region9
  $region8: #{tpu_custom_call.1} parent=0 // pred_region
    _
  $region9: #{tpu_custom_call.1} parent=0 // pred_fallthru
    _
  // Predicated region
  $region10: #{tpu_custom_call.1} parent=0 // pred_check
    _
  $region11: #{tpu_custom_call.1} parent=0 // pred_check_branch
    %21 = sbr.rel (0) target = $region13
  $region12: #{tpu_custom_call.1} parent=0 // pred_region
    _
  $region13: #{tpu_custom_call.1} parent=0 // pred_fallthru
    _
  // Predicated region
  $region14: #{tpu_custom_call.1} parent=0 // pred_check
    _
  $region15: #{tpu_custom_call.1} parent=0 // pred_check_branch
    %23 = sbr.rel (0) target = $region17
  $region16: #{tpu_custom_call.1} parent=0 // pred_region
    _
  $region17: #{tpu_custom_call.1} parent=0 // pred_fallthru
    _
  // Predicated region
  $region18: #{tpu_custom_call.1} parent=0 // pred_check
    _
  $region19: #{tpu_custom_call.1} parent=0 // pred_check_branch
    %25 = sbr.rel (0) target = $region21
  $region20: #{tpu_custom_call.1} parent=0 // pred_region
    _
  $region21: #{tpu_custom_call.1} parent=0 // pred_fallthru
    _
  // Predicated region
  $region22: #{tpu_custom_call.1} parent=0 // pred_check
    _
  $region23: #{tpu_custom_call.1} parent=0 // pred_check_branch
    %27 = sbr.rel (0) target = $region25
  $region24: #{tpu_custom_call.1} parent=0 // pred_region
    _
  $region25: #{tpu_custom_call.1} parent=0 // pred_fallthru
    _
  // Predicated region
  $region26: #{tpu_custom_call.1} parent=0 // pred_check
    _
  $region27: #{tpu_custom_call.1} parent=0 // pred_check_branch
    %29 = sbr.rel (0) target = $region29
  $region28: #{tpu_custom_call.1} parent=0 // pred_region
    _
  $region29: #{tpu_custom_call.1} parent=0 // pred_fallthru
    _
  // Predicated region
  $region30: #{tpu_custom_call.1} parent=0 // pred_check
    _
  $region31: #{tpu_custom_call.1} parent=0 // pred_check_branch
    %31 = sbr.rel (0) target = $region33
  $region32: #{tpu_custom_call.1} parent=0 // pred_region
    _
  $region33: #{tpu_custom_call.1} parent=0 // pred_fallthru
    _
  // Predicated region
  $region34: #{tpu_custom_call.1} parent=0 // pred_check
    _
  $region35: #{tpu_custom_call.1} parent=0 // pred_check_branch
    %33 = sbr.rel (0) target = $region37
  $region36: #{tpu_custom_call.1} parent=0 // pred_region
    _
  $region37: #{tpu_custom_call.1} parent=0 // pred_fallthru
    _
  // Predicated region
  $region38: #{tpu_custom_call.1} parent=0 // pred_check
    _
  $region39: #{tpu_custom_call.1} parent=0 // pred_check_branch
    %35 = sbr.rel (0) target = $region41
  $region40: #{tpu_custom_call.1} parent=0 // pred_region
    _
  $region41: #{tpu_custom_call.1} parent=0 // pred_fallthru
    _
  // Predicated region
  $region42: #{tpu_custom_call.1} parent=0 // pred_check
    _
  $region43: #{tpu_custom_call.1} parent=0 // pred_check_branch
    %37 = sbr.rel (0) target = $region45
  $region44: #{tpu_custom_call.1} parent=0 // pred_region
    _
  $region45: #{tpu_custom_call.1} parent=0 // pred_fallthru
    _
  %v38 = vld [vmem:[%s0] sm:$0xff]
  %v39 = vld [vmem:[%s0 + $0x8] sm:$0xff]
  %v40 = vld [vmem:[%s2] sm:$0xff]
  %v41 = vld [vmem:[%s3] sm:$0x1]
  %v42 = vld [vmem:[%s4] sm:$0xf]
  %v44 = vlaneseq
  %v45 = vshrl.u32 %v44, 7
  %v46 = vsub.s32 0, %v45
  %v47 = vrot.slane %v41, %v46
  %vm49 = vcmask 64512
  %v51 = vsel %vm49, %v38, 0
  %v54 = vsel %vm49, %v39, 0
  %56 = vmatprep.subr.mxu0 0.0
  %57 = vmatpush1.msra.mxu0 %v40
  %58 = vmatprep.subr.mxu0 0.0
  %59 = vmatpush1.msra.mxu0 0.0
  %60 = vmatprep.subr.mxu0 0.0
  %61 = vmatpush1.msra.mxu0 0.0
  %62 = vmatprep.subr.mxu0 0.0
  %63 = vmatpush1.msra.mxu0 0.0
  %64 = vmatprep.subr.mxu0 0.0
  %65 = vmatpush1.msra.mxu0 0.0
  %66 = vmatprep.subr.mxu0 0.0
  %67 = vmatpush1.msra.mxu0 0.0
  %68 = vmatprep.subr.mxu0 0.0
  %69 = vmatpush1.msra.mxu0 0.0
  %70 = vmatprep.subr.mxu0 0.0
  %71 = vmatpush1.msra.mxu0 0.0
  %72 = vmatprep.subr.mxu0 0.0
  %73 = vmatpush1.msra.mxu0 0.0
  %74 = vmatprep.subr.mxu0 0.0
  %75 = vmatpush1.msra.mxu0 0.0
  %76 = vmatprep.subr.mxu0 0.0
  %77 = vmatpush1.msra.mxu0 0.0
  %78 = vmatprep.subr.mxu0 0.0
  %79 = vmatpush1.msra.mxu0 0.0
  %80 = vmatprep.subr.mxu0 0.0
  %81 = vmatpush1.msra.mxu0 0.0
  %82 = vmatprep.subr.mxu0 0.0
  %83 = vmatpush1.msra.mxu0 0.0
  %84 = vmatprep.subr.mxu0 0.0
  %85 = vmatpush1.msra.mxu0 0.0
  %86 = vmatprep.subr.mxu0 0.0
  %87 = vmatpush1.msra.mxu0 0.0
  %88 = vmatprep.subr.mxu0 0.0
  %89 = vmatpush1.msra.mxu0 0.0
  %90 = vmatprep.subr.mxu0 0.0
  %91 = vmatpush1.msra.mxu0 0.0
  %92 = vmatprep.subr.mxu0 0.0
  %93 = vmatpush1.msra.mxu0 0.0
  %94 = vmatprep.subr.mxu0 0.0
  %95 = vmatpush1.msra.mxu0 0.0
  %96 = vmatprep.subr.mxu0 0.0
  %97 = vmatpush1.msra.mxu0 0.0
  %98 = vmatprep.subr.mxu0 0.0
  %99 = vmatpush1.msra.mxu0 0.0
  %100 = vmatprep.subr.mxu0 0.0
  %101 = vmatpush1.msra.mxu0 0.0
  %102 = vmatprep.subr.mxu0 0.0
  %103 = vmatpush1.msra.mxu0 0.0
  %104 = vmatprep.subr.mxu0 0.0
  %105 = vmatpush1.msra.mxu0 0.0
  %106 = vmatprep.subr.mxu0 0.0
  %107 = vmatpush1.msra.mxu0 0.0
  %108 = vmatprep.subr.mxu0 0.0
  %109 = vmatpush1.msra.mxu0 0.0
  %110 = vmatprep.subr.mxu0 0.0
  %111 = vmatpush1.msra.mxu0 0.0
  %112 = vmatprep.subr.mxu0 0.0
  %113 = vmatpush1.msra.mxu0 0.0
  %114 = vmatprep.subr.mxu0 0.0
  %115 = vmatpush1.msra.mxu0 0.0
  %116 = vmatprep.subr.mxu0 0.0
  %117 = vmatpush1.msra.mxu0 0.0
  %118 = vmatprep.subr.mxu0 0.0
  %119 = vmatpush1.msra.mxu0 0.0
  %120 = vmatprep.mubr.f32.mxu0 0.0
  %121 = vmatmul.mubr.f32.gmra.mrb[0].mxu0 %v51
  %v122 = vpop.f32.mrb[0].mxu0
  %v123 = vadd.f32 %v47, %v122
  %v124 = vpop.f32.mrb[0].mxu0
  %125 = vmatprep.mubr.f32.mxu0 0.0
  %126 = vmatmul.mubr.f32.gmra.mrb[0].mxu0 %v54
  %v127 = vpop.f32.mrb[0].mxu0
  %v128 = vadd.f32 %v47, %v127
  %v129 = vpop.f32.mrb[0].mxu0
  %130 = vdwg.mxu0
  %v132 = vsel %vm49, %v42, 0
  %134 = vmatprep.subr.mxu0 0.0
  %135 = vmatpush1.xpose.msra.mxu0 %v51
  %136 = vmatprep.subr.mxu0 0.0
  %137 = vmatpush1.xpose.msra.mxu0 %v54
  %138 = vmatprep.subr.mxu0 0.0
  %139 = vmatpush1.xpose.msra.mxu0 0.0
  %140 = vmatprep.subr.mxu0 0.0
  %141 = vmatpush1.xpose.msra.mxu0 0.0
  %142 = vmatprep.subr.mxu0 0.0
  %143 = vmatpush1.xpose.msra.mxu0 0.0
  %144 = vmatprep.subr.mxu0 0.0
  %145 = vmatpush1.xpose.msra.mxu0 0.0
  %146 = vmatprep.subr.mxu0 0.0
  %147 = vmatpush1.xpose.msra.mxu0 0.0
  %148 = vmatprep.subr.mxu0 0.0
  %149 = vmatpush1.xpose.msra.mxu0 0.0
  %150 = vmatprep.subr.mxu0 0.0
  %151 = vmatpush1.xpose.msra.mxu0 0.0
  %152 = vmatprep.subr.mxu0 0.0
  %153 = vmatpush1.xpose.msra.mxu0 0.0
  %154 = vmatprep.subr.mxu0 0.0
  %155 = vmatpush1.xpose.msra.mxu0 0.0
  %156 = vmatprep.subr.mxu0 0.0
  %157 = vmatpush1.xpose.msra.mxu0 0.0
  %158 = vmatprep.subr.mxu0 0.0
  %159 = vmatpush1.xpose.msra.mxu0 0.0
  %160 = vmatprep.subr.mxu0 0.0
  %161 = vmatpush1.xpose.msra.mxu0 0.0
  %162 = vmatprep.subr.mxu0 0.0
  %163 = vmatpush1.xpose.msra.mxu0 0.0
  %164 = vmatprep.subr.mxu0 0.0
  %165 = vmatpush1.xpose.msra.mxu0 0.0
  %166 = vmatprep.subr.mxu0 0.0
  %167 = vmatpush1.xpose.msra.mxu0 0.0
  %168 = vmatprep.subr.mxu0 0.0
  %169 = vmatpush1.xpose.msra.mxu0 0.0
  %170 = vmatprep.subr.mxu0 0.0
  %171 = vmatpush1.xpose.msra.mxu0 0.0
  %172 = vmatprep.subr.mxu0 0.0
  %173 = vmatpush1.xpose.msra.mxu0 0.0
  %174 = vmatprep.subr.mxu0 0.0
  %175 = vmatpush1.xpose.msra.mxu0 0.0
  %176 = vmatprep.subr.mxu0 0.0
  %177 = vmatpush1.xpose.msra.mxu0 0.0
  %178 = vmatprep.subr.mxu0 0.0
  %179 = vmatpush1.xpose.msra.mxu0 0.0
  %180 = vmatprep.subr.mxu0 0.0
  %181 = vmatpush1.xpose.msra.mxu0 0.0
  %182 = vmatprep.subr.mxu0 0.0
  %183 = vmatpush1.xpose.msra.mxu0 0.0
  %184 = vmatprep.subr.mxu0 0.0
  %185 = vmatpush1.xpose.msra.mxu0 0.0
  %186 = vmatprep.subr.mxu0 0.0
  %187 = vmatpush1.xpose.msra.mxu0 0.0
  %188 = vmatprep.subr.mxu0 0.0
  %189 = vmatpush1.xpose.msra.mxu0 0.0
  %190 = vmatprep.subr.mxu0 0.0
  %191 = vmatpush1.xpose.msra.mxu0 0.0
  %192 = vmatprep.subr.mxu0 0.0
  %193 = vmatpush1.xpose.msra.mxu0 0.0
  %194 = vmatprep.subr.mxu0 0.0
  %195 = vmatpush1.xpose.msra.mxu0 0.0
  %196 = vmatprep.subr.mxu0 0.0
  %197 = vmatpush1.xpose.msra.mxu0 0.0
  %198 = vmatprep.mubr.f32.mxu0 0.0
  %199 = vmatmul.mubr.f32.gmra.mrb[0].mxu0 %v132
  %v200 = vpop.f32.mrb[0].mxu0
  %v201 = vadd.f32 0.0, %v200
  %v202 = vpop.f32.mrb[0].mxu0
  %203 = vdwg.mxu0
  %vm204 = vcmask 125952
  %v205 = vsel %vm204, %v201, -inf
  %206 = vmax.xlane.f32.xlu0 %v205
  %v207 = vpop.xlane.xlu0 %206
  %v208 = vlaneseq
  %v209 = vshrl.u32 %v208, 7
  %v210 = vsub.s32 0, %v209
  %v211 = vrot.slane %v207, %v210
  %v212 = vadd.f32 %v123, %v211
  %v213 = vadd.f32 %v128, %v211
  %v214 = vmul.f32 %v212, 0.2
  %v215 = vmul.f32 %v213, 0.2
  %v216 = vmax.f32 %v212, %v214
  %v217 = vmax.f32 %v213, %v215
  %219 = vset.pattern.permute.xlu0 68
  %220 = vperm.xlu0 %219, %v123
  %v221 = vpop.permute.xlu0 %220
  %224 = vset.pattern.permute.xlu0 68
  %225 = vperm.xlu0 %224, %v128
  %v226 = vpop.permute.xlu0 %225
  %v228 = vlaneseq
  %v229 = vshrl.u32 %v228, 7
  %v230 = vsub.s32 0, %v229
  %v231 = vrot.slane %v201, %v230
  %v232 = vadd.f32 %v221, %v231
  %v233 = vadd.f32 %v226, %v231
  %v234 = vmul.f32 %v232, 0.2
  %v235 = vmul.f32 %v233, 0.2
  %v236 = vmax.f32 %v232, %v234
  %v237 = vmax.f32 %v233, %v235
  %v238 = vld [vmem:[%s1] sm:$0xff]
  %v239 = vld [vmem:[%s1 + $0x8] sm:$0xff]
  %241 = vset.pattern.permute.xlu0 68
  %242 = vperm.xlu0 %241, %v216
  %v243 = vpop.permute.xlu0 %242
  %246 = vset.pattern.permute.xlu0 68
  %247 = vperm.xlu0 %246, %v217
  %v248 = vpop.permute.xlu0 %247
  %v250 = vsub.f32 %v236, %v243
  %v251 = vsub.f32 %v237, %v248
  %v252 = vmul.f32 %v250, 1.442695
  %v253 = vpow.pop %v252
  %v254 = vmul.f32 %v251, 1.442695
  %v255 = vpow.pop %v254
  %v256 = vmul.f32 %v253, %v238
  %v257 = vmul.f32 %v255, %v239
  %vm258 = vcmask 130048
  %v260 = vsel %vm258, %v256, 0
  %v263 = vsel %vm258, %v257, 0
  %265 = vmatprep.subr.mxu0 0.0
  %266 = vmatpush1.msra.mxu0 %v123
  %267 = vmatprep.subr.mxu0 0.0
  %268 = vmatpush1.msra.mxu0 %v128
  %269 = vmatprep.subr.mxu0 0.0
  %270 = vmatpush1.msra.mxu0 0.0
  %271 = vmatprep.subr.mxu0 0.0
  %272 = vmatpush1.msra.mxu0 0.0
  %273 = vmatprep.subr.mxu0 0.0
  %274 = vmatpush1.msra.mxu0 0.0
  %275 = vmatprep.subr.mxu0 0.0
  %276 = vmatpush1.msra.mxu0 0.0
  %277 = vmatprep.subr.mxu0 0.0
  %278 = vmatpush1.msra.mxu0 0.0
  %279 = vmatprep.subr.mxu0 0.0
  %280 = vmatpush1.msra.mxu0 0.0
  %281 = vmatprep.subr.mxu0 0.0
  %282 = vmatpush1.msra.mxu0 0.0
  %283 = vmatprep.subr.mxu0 0.0
  %284 = vmatpush1.msra.mxu0 0.0
  %285 = vmatprep.subr.mxu0 0.0
  %286 = vmatpush1.msra.mxu0 0.0
  %287 = vmatprep.subr.mxu0 0.0
  %288 = vmatpush1.msra.mxu0 0.0
  %289 = vmatprep.subr.mxu0 0.0
  %290 = vmatpush1.msra.mxu0 0.0
  %291 = vmatprep.subr.mxu0 0.0
  %292 = vmatpush1.msra.mxu0 0.0
  %293 = vmatprep.subr.mxu0 0.0
  %294 = vmatpush1.msra.mxu0 0.0
  %295 = vmatprep.subr.mxu0 0.0
  %296 = vmatpush1.msra.mxu0 0.0
  %297 = vmatprep.subr.mxu0 0.0
  %298 = vmatpush1.msra.mxu0 0.0
  %299 = vmatprep.subr.mxu0 0.0
  %300 = vmatpush1.msra.mxu0 0.0
  %301 = vmatprep.subr.mxu0 0.0
  %302 = vmatpush1.msra.mxu0 0.0
  %303 = vmatprep.subr.mxu0 0.0
  %304 = vmatpush1.msra.mxu0 0.0
  %305 = vmatprep.subr.mxu0 0.0
  %306 = vmatpush1.msra.mxu0 0.0
  %307 = vmatprep.subr.mxu0 0.0
  %308 = vmatpush1.msra.mxu0 0.0
  %309 = vmatprep.subr.mxu0 0.0
  %310 = vmatpush1.msra.mxu0 0.0
  %311 = vmatprep.subr.mxu0 0.0
  %312 = vmatpush1.msra.mxu0 0.0
  %313 = vmatprep.subr.mxu0 0.0
  %314 = vmatpush1.msra.mxu0 0.0
  %315 = vmatprep.subr.mxu0 0.0
  %316 = vmatpush1.msra.mxu0 0.0
  %317 = vmatprep.subr.mxu0 0.0
  %318 = vmatpush1.msra.mxu0 0.0
  %319 = vmatprep.subr.mxu0 0.0
  %320 = vmatpush1.msra.mxu0 0.0
  %321 = vmatprep.subr.mxu0 0.0
  %322 = vmatpush1.msra.mxu0 0.0
  %323 = vmatprep.subr.mxu0 0.0
  %324 = vmatpush1.msra.mxu0 0.0
  %325 = vmatprep.subr.mxu0 0.0
  %326 = vmatpush1.msra.mxu0 0.0
  %327 = vmatprep.subr.mxu0 0.0
  %328 = vmatpush1.msra.mxu0 0.0
  %329 = vmatprep.mubr.f32.mxu0 0.0
  %330 = vmatmul.mubr.f32.gmra.mrb[0].mxu0 %v260
  %v331 = vpop.f32.mrb[0].mxu0
  %v332 = vadd.f32 0.0, %v331
  %v333 = vpop.f32.mrb[0].mxu0
  %334 = vmatprep.mubr.f32.mxu0 0.0
  %335 = vmatmul.mubr.f32.gmra.mrb[0].mxu0 %v263
  %v336 = vpop.f32.mrb[0].mxu0
  %v337 = vadd.f32 0.0, %v336
  %v338 = vpop.f32.mrb[0].mxu0
  %339 = vdwg.mxu0
  %v340 = vmax.f32 %v332, 1e-30
  %v341 = vmax.f32 %v337, 1e-30
  %v342 = vrcp.pop %v340
  %v343 = vrcp.pop %v341
  %345 = vset.pattern.permute.xlu0 16
  %346 = vperm.xlu0 %345, %v342
  %v347 = vpop.permute.xlu0 %346
  %350 = vset.pattern.permute.xlu0 16
  %351 = vperm.xlu0 %350, %v343
  %v352 = vpop.permute.xlu0 %351
  %v354 = vmul.f32 %v332, %v347
  %v355 = vmul.f32 %v337, %v352
  %v356 = vmul.f32 %v354, 0.01
  %v357 = vmul.f32 %v355, 0.01
  %v358 = vmax.f32 %v354, %v356
  %v359 = vmax.f32 %v355, %v357
  %360 = vst.msk [vmem:[#allocation2] sm:$0xff] %vm258, %v358
  %361 = vst.msk [vmem:[#allocation2 + $0x8] sm:$0xff] %vm258, %v359
  %v362 = vlaneseq
  %v363 = vshrl.u32 %v362, 7
  %v364 = vsub.s32 1, %v363
  %v365 = vrot.slane %v207, %v364
  %v366 = vadd.f32 %v123, %v365
  %v367 = vadd.f32 %v128, %v365
  %v368 = vmul.f32 %v366, 0.2
  %v369 = vmul.f32 %v367, 0.2
  %v370 = vmax.f32 %v366, %v368
  %v371 = vmax.f32 %v367, %v369
  %372 = vset.pattern.permute.xlu0 69
  %373 = vperm.xlu0 %372, %v123
  %v374 = vpop.permute.xlu0 %373
  %376 = vset.pattern.permute.xlu0 69
  %377 = vperm.xlu0 %376, %v128
  %v378 = vpop.permute.xlu0 %377
  %v380 = vlaneseq
  %v381 = vshrl.u32 %v380, 7
  %v382 = vsub.s32 1, %v381
  %v383 = vrot.slane %v201, %v382
  %v384 = vadd.f32 %v374, %v383
  %v385 = vadd.f32 %v378, %v383
  %v386 = vmul.f32 %v384, 0.2
  %v387 = vmul.f32 %v385, 0.2
  %v388 = vmax.f32 %v384, %v386
  %v389 = vmax.f32 %v385, %v387
  %v390 = vld [vmem:[%s1] sm:$0xff]
  %v391 = vld [vmem:[%s1 + $0x8] sm:$0xff]
  %393 = vset.pattern.permute.xlu0 69
  %394 = vperm.xlu0 %393, %v370
  %v395 = vpop.permute.xlu0 %394
  %398 = vset.pattern.permute.xlu0 69
  %399 = vperm.xlu0 %398, %v371
  %v400 = vpop.permute.xlu0 %399
  %v402 = vsub.f32 %v388, %v395
  %v403 = vsub.f32 %v389, %v400
  %v404 = vmul.f32 %v402, 1.442695
  %v405 = vpow.pop %v404
  %v406 = vmul.f32 %v403, 1.442695
  %v407 = vpow.pop %v406
  %v408 = vmul.f32 %v405, %v390
  %v409 = vmul.f32 %v407, %v391
  %410 = vrot.lane.b32.xlu0 %v123, 111
  %v411 = vpop.permute.xlu0 %410
  %412 = vrot.lane.b32.xlu0 %v128, 111
  %v413 = vpop.permute.xlu0 %412
  %v417 = vsel %vm258, %v408, 0
  %v420 = vsel %vm258, %v409, 0
  %422 = vmatprep.subr.mxu0 0.0
  %423 = vmatpush1.msra.mxu0 %v411
  %424 = vmatprep.subr.mxu0 0.0
  %425 = vmatpush1.msra.mxu0 %v413
  %426 = vmatprep.subr.mxu0 0.0
  %427 = vmatpush1.msra.mxu0 0.0
  %428 = vmatprep.subr.mxu0 0.0
  %429 = vmatpush1.msra.mxu0 0.0
  %430 = vmatprep.subr.mxu0 0.0
  %431 = vmatpush1.msra.mxu0 0.0
  %432 = vmatprep.subr.mxu0 0.0
  %433 = vmatpush1.msra.mxu0 0.0
  %434 = vmatprep.subr.mxu0 0.0
  %435 = vmatpush1.msra.mxu0 0.0
  %436 = vmatprep.subr.mxu0 0.0
  %437 = vmatpush1.msra.mxu0 0.0
  %438 = vmatprep.subr.mxu0 0.0
  %439 = vmatpush1.msra.mxu0 0.0
  %440 = vmatprep.subr.mxu0 0.0
  %441 = vmatpush1.msra.mxu0 0.0
  %442 = vmatprep.subr.mxu0 0.0
  %443 = vmatpush1.msra.mxu0 0.0
  %444 = vmatprep.subr.mxu0 0.0
  %445 = vmatpush1.msra.mxu0 0.0
  %446 = vmatprep.subr.mxu0 0.0
  %447 = vmatpush1.msra.mxu0 0.0
  %448 = vmatprep.subr.mxu0 0.0
  %449 = vmatpush1.msra.mxu0 0.0
  %450 = vmatprep.subr.mxu0 0.0
  %451 = vmatpush1.msra.mxu0 0.0
  %452 = vmatprep.subr.mxu0 0.0
  %453 = vmatpush1.msra.mxu0 0.0
  %454 = vmatprep.subr.mxu0 0.0
  %455 = vmatpush1.msra.mxu0 0.0
  %456 = vmatprep.subr.mxu0 0.0
  %457 = vmatpush1.msra.mxu0 0.0
  %458 = vmatprep.subr.mxu0 0.0
  %459 = vmatpush1.msra.mxu0 0.0
  %460 = vmatprep.subr.mxu0 0.0
  %461 = vmatpush1.msra.mxu0 0.0
  %462 = vmatprep.subr.mxu0 0.0
  %463 = vmatpush1.msra.mxu0 0.0
  %464 = vmatprep.subr.mxu0 0.0
  %465 = vmatpush1.msra.mxu0 0.0
  %466 = vmatprep.subr.mxu0 0.0
  %467 = vmatpush1.msra.mxu0 0.0
  %468 = vmatprep.subr.mxu0 0.0
  %469 = vmatpush1.msra.mxu0 0.0
  %470 = vmatprep.subr.mxu0 0.0
  %471 = vmatpush1.msra.mxu0 0.0
  %472 = vmatprep.subr.mxu0 0.0
  %473 = vmatpush1.msra.mxu0 0.0
  %474 = vmatprep.subr.mxu0 0.0
  %475 = vmatpush1.msra.mxu0 0.0
  %476 = vmatprep.subr.mxu0 0.0
  %477 = vmatpush1.msra.mxu0 0.0
  %478 = vmatprep.subr.mxu0 0.0
  %479 = vmatpush1.msra.mxu0 0.0
  %480 = vmatprep.subr.mxu0 0.0
  %481 = vmatpush1.msra.mxu0 0.0
  %482 = vmatprep.subr.mxu0 0.0
  %483 = vmatpush1.msra.mxu0 0.0
  %484 = vmatprep.subr.mxu0 0.0
  %485 = vmatpush1.msra.mxu0 0.0
  %486 = vmatprep.mubr.f32.mxu0 0.0
  %487 = vmatmul.mubr.f32.gmra.mrb[0].mxu0 %v417
  %v488 = vpop.f32.mrb[0].mxu0
  %v489 = vadd.f32 0.0, %v488
  %v490 = vpop.f32.mrb[0].mxu0
  %491 = vmatprep.mubr.f32.mxu0 0.0
  %492 = vmatmul.mubr.f32.gmra.mrb[0].mxu0 %v420
  %v493 = vpop.f32.mrb[0].mxu0
  %v494 = vadd.f32 0.0, %v493
  %v495 = vpop.f32.mrb[0].mxu0
  %496 = vdwg.mxu0
  %v497 = vmax.f32 %v489, 1e-30
  %v498 = vmax.f32 %v494, 1e-30
  %v499 = vrcp.pop %v497
  %v500 = vrcp.pop %v498
  %502 = vset.pattern.permute.xlu0 16
  %503 = vperm.xlu0 %502, %v499
  %v504 = vpop.permute.xlu0 %503
  %507 = vset.pattern.permute.xlu0 16
  %508 = vperm.xlu0 %507, %v500
  %v509 = vpop.permute.xlu0 %508
  %v511 = vmul.f32 %v489, %v504
  %v512 = vmul.f32 %v494, %v509
  %v513 = vmul.f32 %v511, 0.01
  %v514 = vmul.f32 %v512, 0.01
  %v515 = vmax.f32 %v511, %v513
  %v516 = vmax.f32 %v512, %v514
  %519 = vrot.lane.b32.xlu0 %v515, 16
  %v520 = vpop.permute.xlu0 %519
  %521 = vrot.lane.b32.xlu0 %v516, 16
  %v522 = vpop.permute.xlu0 %521
  %vm525 = vcmask 261248
  %526 = vst.msk [vmem:[#allocation2] sm:$0xff] %vm525, %v520
  %527 = vst.msk [vmem:[#allocation2 + $0x8] sm:$0xff] %vm525, %v522
  %v528 = vlaneseq
  %v529 = vshrl.u32 %v528, 7
  %v530 = vsub.s32 2, %v529
  %v531 = vrot.slane %v207, %v530
  %v532 = vadd.f32 %v123, %v531
  %v533 = vadd.f32 %v128, %v531
  %v534 = vmul.f32 %v532, 0.2
  %v535 = vmul.f32 %v533, 0.2
  %v536 = vmax.f32 %v532, %v534
  %v537 = vmax.f32 %v533, %v535
  %538 = vset.pattern.permute.xlu0 70
  %539 = vperm.xlu0 %538, %v123
  %v540 = vpop.permute.xlu0 %539
  %542 = vset.pattern.permute.xlu0 70
  %543 = vperm.xlu0 %542, %v128
  %v544 = vpop.permute.xlu0 %543
  %v546 = vlaneseq
  %v547 = vshrl.u32 %v546, 7
  %v548 = vsub.s32 2, %v547
  %v549 = vrot.slane %v201, %v548
  %v550 = vadd.f32 %v540, %v549
  %v551 = vadd.f32 %v544, %v549
  %v552 = vmul.f32 %v550, 0.2
  %v553 = vmul.f32 %v551, 0.2
  %v554 = vmax.f32 %v550, %v552
  %v555 = vmax.f32 %v551, %v553
  %v556 = vld [vmem:[%s1] sm:$0xff]
  %v557 = vld [vmem:[%s1 + $0x8] sm:$0xff]
  %559 = vset.pattern.permute.xlu0 70
  %560 = vperm.xlu0 %559, %v536
  %v561 = vpop.permute.xlu0 %560
  %564 = vset.pattern.permute.xlu0 70
  %565 = vperm.xlu0 %564, %v537
  %v566 = vpop.permute.xlu0 %565
  %v568 = vsub.f32 %v554, %v561
  %v569 = vsub.f32 %v555, %v566
  %v570 = vmul.f32 %v568, 1.442695
  %v571 = vpow.pop %v570
  %v572 = vmul.f32 %v569, 1.442695
  %v573 = vpow.pop %v572
  %v574 = vmul.f32 %v571, %v556
  %v575 = vmul.f32 %v573, %v557
  %576 = vrot.lane.b32.xlu0 %v123, 94
  %v577 = vpop.permute.xlu0 %576
  %578 = vrot.lane.b32.xlu0 %v128, 94
  %v579 = vpop.permute.xlu0 %578
  %v583 = vsel %vm258, %v574, 0
  %v586 = vsel %vm258, %v575, 0
  %588 = vmatprep.subr.mxu0 0.0
  %589 = vmatpush1.msra.mxu0 %v577
  %590 = vmatprep.subr.mxu0 0.0
  %591 = vmatpush1.msra.mxu0 %v579
  %592 = vmatprep.subr.mxu0 0.0
  %593 = vmatpush1.msra.mxu0 0.0
  %594 = vmatprep.subr.mxu0 0.0
  %595 = vmatpush1.msra.mxu0 0.0
  %596 = vmatprep.subr.mxu0 0.0
  %597 = vmatpush1.msra.mxu0 0.0
  %598 = vmatprep.subr.mxu0 0.0
  %599 = vmatpush1.msra.mxu0 0.0
  %600 = vmatprep.subr.mxu0 0.0
  %601 = vmatpush1.msra.mxu0 0.0
  %602 = vmatprep.subr.mxu0 0.0
  %603 = vmatpush1.msra.mxu0 0.0
  %604 = vmatprep.subr.mxu0 0.0
  %605 = vmatpush1.msra.mxu0 0.0
  %606 = vmatprep.subr.mxu0 0.0
  %607 = vmatpush1.msra.mxu0 0.0
  %608 = vmatprep.subr.mxu0 0.0
  %609 = vmatpush1.msra.mxu0 0.0
  %610 = vmatprep.subr.mxu0 0.0
  %611 = vmatpush1.msra.mxu0 0.0
  %612 = vmatprep.subr.mxu0 0.0
  %613 = vmatpush1.msra.mxu0 0.0
  %614 = vmatprep.subr.mxu0 0.0
  %615 = vmatpush1.msra.mxu0 0.0
  %616 = vmatprep.subr.mxu0 0.0
  %617 = vmatpush1.msra.mxu0 0.0
  %618 = vmatprep.subr.mxu0 0.0
  %619 = vmatpush1.msra.mxu0 0.0
  %620 = vmatprep.subr.mxu0 0.0
  %621 = vmatpush1.msra.mxu0 0.0
  %622 = vmatprep.subr.mxu0 0.0
  %623 = vmatpush1.msra.mxu0 0.0
  %624 = vmatprep.subr.mxu0 0.0
  %625 = vmatpush1.msra.mxu0 0.0
  %626 = vmatprep.subr.mxu0 0.0
  %627 = vmatpush1.msra.mxu0 0.0
  %628 = vmatprep.subr.mxu0 0.0
  %629 = vmatpush1.msra.mxu0 0.0
  %630 = vmatprep.subr.mxu0 0.0
  %631 = vmatpush1.msra.mxu0 0.0
  %632 = vmatprep.subr.mxu0 0.0
  %633 = vmatpush1.msra.mxu0 0.0
  %634 = vmatprep.subr.mxu0 0.0
  %635 = vmatpush1.msra.mxu0 0.0
  %636 = vmatprep.subr.mxu0 0.0
  %637 = vmatpush1.msra.mxu0 0.0
  %638 = vmatprep.subr.mxu0 0.0
  %639 = vmatpush1.msra.mxu0 0.0
  %640 = vmatprep.subr.mxu0 0.0
  %641 = vmatpush1.msra.mxu0 0.0
  %642 = vmatprep.subr.mxu0 0.0
  %643 = vmatpush1.msra.mxu0 0.0
  %644 = vmatprep.subr.mxu0 0.0
  %645 = vmatpush1.msra.mxu0 0.0
  %646 = vmatprep.subr.mxu0 0.0
  %647 = vmatpush1.msra.mxu0 0.0
  %648 = vmatprep.subr.mxu0 0.0
  %649 = vmatpush1.msra.mxu0 0.0
  %650 = vmatprep.subr.mxu0 0.0
  %651 = vmatpush1.msra.mxu0 0.0
  %652 = vmatprep.mubr.f32.mxu0 0.0
  %653 = vmatmul.mubr.f32.gmra.mrb[0].mxu0 %v583
  %v654 = vpop.f32.mrb[0].mxu0
  %v655 = vadd.f32 0.0, %v654
  %v656 = vpop.f32.mrb[0].mxu0
  %657 = vmatprep.mubr.f32.mxu0 0.0
  %658 = vmatmul.mubr.f32.gmra.mrb[0].mxu0 %v586
  %v659 = vpop.f32.mrb[0].mxu0
  %v660 = vadd.f32 0.0, %v659
  %v661 = vpop.f32.mrb[0].mxu0
  %662 = vdwg.mxu0
  %v663 = vmax.f32 %v655, 1e-30
  %v664 = vmax.f32 %v660, 1e-30
  %v665 = vrcp.pop %v663
  %v666 = vrcp.pop %v664
  %668 = vset.pattern.permute.xlu0 16
  %669 = vperm.xlu0 %668, %v665
  %v670 = vpop.permute.xlu0 %669
  %673 = vset.pattern.permute.xlu0 16
  %674 = vperm.xlu0 %673, %v666
  %v675 = vpop.permute.xlu0 %674
  %v677 = vmul.f32 %v655, %v670
  %v678 = vmul.f32 %v660, %v675
  %v679 = vmul.f32 %v677, 0.01
  %v680 = vmul.f32 %v678, 0.01
  %v681 = vmax.f32 %v677, %v679
  %v682 = vmax.f32 %v678, %v680
  %685 = vrot.lane.b32.xlu0 %v681, 32
  %v686 = vpop.permute.xlu0 %685
  %687 = vrot.lane.b32.xlu0 %v682, 32
  %v688 = vpop.permute.xlu0 %687
  %vm691 = vcmask 392448
  %692 = vst.msk [vmem:[#allocation2] sm:$0xff] %vm691, %v686
  %693 = vst.msk [vmem:[#allocation2 + $0x8] sm:$0xff] %vm691, %v688
  %v694 = vlaneseq
  %v695 = vshrl.u32 %v694, 7
  %v696 = vsub.s32 3, %v695
  %v697 = vrot.slane %v207, %v696
  %v698 = vadd.f32 %v123, %v697
  %v699 = vadd.f32 %v128, %v697
  %v700 = vmul.f32 %v698, 0.2
  %v701 = vmul.f32 %v699, 0.2
  %v702 = vmax.f32 %v698, %v700
  %v703 = vmax.f32 %v699, %v701
  %704 = vset.pattern.permute.xlu0 71
  %705 = vperm.xlu0 %704, %v123
  %v706 = vpop.permute.xlu0 %705
  %708 = vset.pattern.permute.xlu0 71
  %709 = vperm.xlu0 %708, %v128
  %v710 = vpop.permute.xlu0 %709
  %v712 = vlaneseq
  %v713 = vshrl.u32 %v712, 7
  %v714 = vsub.s32 3, %v713
  %v715 = vrot.slane %v201, %v714
  %v716 = vadd.f32 %v706, %v715
  %v717 = vadd.f32 %v710, %v715
  %v718 = vmul.f32 %v716, 0.2
  %v719 = vmul.f32 %v717, 0.2
  %v720 = vmax.f32 %v716, %v718
  %v721 = vmax.f32 %v717, %v719
  %v722 = vld [vmem:[%s1] sm:$0xff]
  %v723 = vld [vmem:[%s1 + $0x8] sm:$0xff]
  %725 = vset.pattern.permute.xlu0 71
  %726 = vperm.xlu0 %725, %v702
  %v727 = vpop.permute.xlu0 %726
  %730 = vset.pattern.permute.xlu0 71
  %731 = vperm.xlu0 %730, %v703
  %v732 = vpop.permute.xlu0 %731
  %v734 = vsub.f32 %v720, %v727
  %v735 = vsub.f32 %v721, %v732
  %v736 = vmul.f32 %v734, 1.442695
  %v737 = vpow.pop %v736
  %v738 = vmul.f32 %v735, 1.442695
  %v739 = vpow.pop %v738
  %v740 = vmul.f32 %v737, %v722
  %v741 = vmul.f32 %v739, %v723
  %742 = vrot.lane.b32.xlu0 %v123, 77
  %v743 = vpop.permute.xlu0 %742
  %744 = vrot.lane.b32.xlu0 %v128, 77
  %v745 = vpop.permute.xlu0 %744
  %v749 = vsel %vm258, %v740, 0
  %v752 = vsel %vm258, %v741, 0
  %754 = vmatprep.subr.mxu0 0.0
  %755 = vmatpush1.msra.mxu0 %v743
  %756 = vmatprep.subr.mxu0 0.0
  %757 = vmatpush1.msra.mxu0 %v745
  %758 = vmatprep.subr.mxu0 0.0
  %759 = vmatpush1.msra.mxu0 0.0
  %760 = vmatprep.subr.mxu0 0.0
  %761 = vmatpush1.msra.mxu0 0.0
  %762 = vmatprep.subr.mxu0 0.0
  %763 = vmatpush1.msra.mxu0 0.0
  %764 = vmatprep.subr.mxu0 0.0
  %765 = vmatpush1.msra.mxu0 0.0
  %766 = vmatprep.subr.mxu0 0.0
  %767 = vmatpush1.msra.mxu0 0.0
  %768 = vmatprep.subr.mxu0 0.0
  %769 = vmatpush1.msra.mxu0 0.0
  %770 = vmatprep.subr.mxu0 0.0
  %771 = vmatpush1.msra.mxu0 0.0
  %772 = vmatprep.subr.mxu0 0.0
  %773 = vmatpush1.msra.mxu0 0.0
  %774 = vmatprep.subr.mxu0 0.0
  %775 = vmatpush1.msra.mxu0 0.0
  %776 = vmatprep.subr.mxu0 0.0
  %777 = vmatpush1.msra.mxu0 0.0
  %778 = vmatprep.subr.mxu0 0.0
  %779 = vmatpush1.msra.mxu0 0.0
  %780 = vmatprep.subr.mxu0 0.0
  %781 = vmatpush1.msra.mxu0 0.0
  %782 = vmatprep.subr.mxu0 0.0
  %783 = vmatpush1.msra.mxu0 0.0
  %784 = vmatprep.subr.mxu0 0.0
  %785 = vmatpush1.msra.mxu0 0.0
  %786 = vmatprep.subr.mxu0 0.0
  %787 = vmatpush1.msra.mxu0 0.0
  %788 = vmatprep.subr.mxu0 0.0
  %789 = vmatpush1.msra.mxu0 0.0
  %790 = vmatprep.subr.mxu0 0.0
  %791 = vmatpush1.msra.mxu0 0.0
  %792 = vmatprep.subr.mxu0 0.0
  %793 = vmatpush1.msra.mxu0 0.0
  %794 = vmatprep.subr.mxu0 0.0
  %795 = vmatpush1.msra.mxu0 0.0
  %796 = vmatprep.subr.mxu0 0.0
  %797 = vmatpush1.msra.mxu0 0.0
  %798 = vmatprep.subr.mxu0 0.0
  %799 = vmatpush1.msra.mxu0 0.0
  %800 = vmatprep.subr.mxu0 0.0
  %801 = vmatpush1.msra.mxu0 0.0
  %802 = vmatprep.subr.mxu0 0.0
  %803 = vmatpush1.msra.mxu0 0.0
  %804 = vmatprep.subr.mxu0 0.0
  %805 = vmatpush1.msra.mxu0 0.0
  %806 = vmatprep.subr.mxu0 0.0
  %807 = vmatpush1.msra.mxu0 0.0
  %808 = vmatprep.subr.mxu0 0.0
  %809 = vmatpush1.msra.mxu0 0.0
  %810 = vmatprep.subr.mxu0 0.0
  %811 = vmatpush1.msra.mxu0 0.0
  %812 = vmatprep.subr.mxu0 0.0
  %813 = vmatpush1.msra.mxu0 0.0
  %814 = vmatprep.subr.mxu0 0.0
  %815 = vmatpush1.msra.mxu0 0.0
  %816 = vmatprep.subr.mxu0 0.0
  %817 = vmatpush1.msra.mxu0 0.0
  %818 = vmatprep.mubr.f32.mxu0 0.0
  %819 = vmatmul.mubr.f32.gmra.mrb[0].mxu0 %v749
  %v820 = vpop.f32.mrb[0].mxu0
  %v821 = vadd.f32 0.0, %v820
  %v822 = vpop.f32.mrb[0].mxu0
  %823 = vmatprep.mubr.f32.mxu0 0.0
  %824 = vmatmul.mubr.f32.gmra.mrb[0].mxu0 %v752
  %v825 = vpop.f32.mrb[0].mxu0
  %v826 = vadd.f32 0.0, %v825
  %v827 = vpop.f32.mrb[0].mxu0
  %828 = vdwg.mxu0
  %v829 = vmax.f32 %v821, 1e-30
  %v830 = vmax.f32 %v826, 1e-30
  %v831 = vrcp.pop %v829
  %v832 = vrcp.pop %v830
  %834 = vset.pattern.permute.xlu0 16
  %835 = vperm.xlu0 %834, %v831
  %v836 = vpop.permute.xlu0 %835
  %839 = vset.pattern.permute.xlu0 16
  %840 = vperm.xlu0 %839, %v832
  %v841 = vpop.permute.xlu0 %840
  %v843 = vmul.f32 %v821, %v836
  %v844 = vmul.f32 %v826, %v841
  %v845 = vmul.f32 %v843, 0.01
  %v846 = vmul.f32 %v844, 0.01
  %v847 = vmax.f32 %v843, %v845
  %v848 = vmax.f32 %v844, %v846
  %851 = vrot.lane.b32.xlu0 %v847, 48
  %v852 = vpop.permute.xlu0 %851
  %853 = vrot.lane.b32.xlu0 %v848, 48
  %v854 = vpop.permute.xlu0 %853
  %vm857 = vcmask 523648
  %858 = vst.msk [vmem:[#allocation2] sm:$0xff] %vm857, %v852
  %859 = vst.msk [vmem:[#allocation2 + $0x8] sm:$0xff] %vm857, %v854
  %v860 = vld [vmem:[#allocation2] sm:$0xff]
  %v861 = vld [vmem:[#allocation2 + $0x8] sm:$0xff]
  %v862 = vld [vmem:[%s5] sm:$0xff]
  %v863 = vld [vmem:[%s5 + $0x8] sm:$0xff]
  %v864 = vld [vmem:[%s5 + $0x10] sm:$0xff]
  %v865 = vld [vmem:[%s5 + $0x18] sm:$0xff]
  %v866 = vld [vmem:[%s5 + $0x20] sm:$0xff]
  %v867 = vld [vmem:[%s5 + $0x28] sm:$0xff]
  %v868 = vld [vmem:[%s5 + $0x30] sm:$0xff]
  %v869 = vld [vmem:[%s5 + $0x38] sm:$0xff]
  %v870 = vld [vmem:[%s6] sm:$0x1]
  %v871 = vld [vmem:[%s7] sm:$0xf]
  %v873 = vlaneseq
  %v874 = vshrl.u32 %v873, 7
  %v875 = vsub.s32 0, %v874
  %v876 = vrot.slane %v870, %v875
  %vm878 = vcmask 523264
  %v880 = vsel %vm878, %v860, 0
  %v883 = vsel %vm878, %v861, 0
  %885 = vmatprep.subr.mxu0 0.0
  %886 = vmatpush1.msra.mxu0 %v862
  %887 = vmatprep.subr.mxu0 0.0
  %888 = vmatpush1.msra.mxu0 %v863
  %889 = vmatprep.subr.mxu0 0.0
  %890 = vmatpush1.msra.mxu0 %v864
  %891 = vmatprep.subr.mxu0 0.0
  %892 = vmatpush1.msra.mxu0 %v865
  %893 = vmatprep.subr.mxu0 0.0
  %894 = vmatpush1.msra.mxu0 %v866
  %895 = vmatprep.subr.mxu0 0.0
  %896 = vmatpush1.msra.mxu0 %v867
  %897 = vmatprep.subr.mxu0 0.0
  %898 = vmatpush1.msra.mxu0 %v868
  %899 = vmatprep.subr.mxu0 0.0
  %900 = vmatpush1.msra.mxu0 %v869
  %901 = vmatprep.subr.mxu0 0.0
  %902 = vmatpush1.msra.mxu0 0.0
  %903 = vmatprep.subr.mxu0 0.0
  %904 = vmatpush1.msra.mxu0 0.0
  %905 = vmatprep.subr.mxu0 0.0
  %906 = vmatpush1.msra.mxu0 0.0
  %907 = vmatprep.subr.mxu0 0.0
  %908 = vmatpush1.msra.mxu0 0.0
  %909 = vmatprep.subr.mxu0 0.0
  %910 = vmatpush1.msra.mxu0 0.0
  %911 = vmatprep.subr.mxu0 0.0
  %912 = vmatpush1.msra.mxu0 0.0
  %913 = vmatprep.subr.mxu0 0.0
  %914 = vmatpush1.msra.mxu0 0.0
  %915 = vmatprep.subr.mxu0 0.0
  %916 = vmatpush1.msra.mxu0 0.0
  %917 = vmatprep.subr.mxu0 0.0
  %918 = vmatpush1.msra.mxu0 0.0
  %919 = vmatprep.subr.mxu0 0.0
  %920 = vmatpush1.msra.mxu0 0.0
  %921 = vmatprep.subr.mxu0 0.0
  %922 = vmatpush1.msra.mxu0 0.0
  %923 = vmatprep.subr.mxu0 0.0
  %924 = vmatpush1.msra.mxu0 0.0
  %925 = vmatprep.subr.mxu0 0.0
  %926 = vmatpush1.msra.mxu0 0.0
  %927 = vmatprep.subr.mxu0 0.0
  %928 = vmatpush1.msra.mxu0 0.0
  %929 = vmatprep.subr.mxu0 0.0
  %930 = vmatpush1.msra.mxu0 0.0
  %931 = vmatprep.subr.mxu0 0.0
  %932 = vmatpush1.msra.mxu0 0.0
  %933 = vmatprep.subr.mxu0 0.0
  %934 = vmatpush1.msra.mxu0 0.0
  %935 = vmatprep.subr.mxu0 0.0
  %936 = vmatpush1.msra.mxu0 0.0
  %937 = vmatprep.subr.mxu0 0.0
  %938 = vmatpush1.msra.mxu0 0.0
  %939 = vmatprep.subr.mxu0 0.0
  %940 = vmatpush1.msra.mxu0 0.0
  %941 = vmatprep.subr.mxu0 0.0
  %942 = vmatpush1.msra.mxu0 0.0
  %943 = vmatprep.subr.mxu0 0.0
  %944 = vmatpush1.msra.mxu0 0.0
  %945 = vmatprep.subr.mxu0 0.0
  %946 = vmatpush1.msra.mxu0 0.0
  %947 = vmatprep.subr.mxu0 0.0
  %948 = vmatpush1.msra.mxu0 0.0
  %949 = vmatprep.mubr.f32.mxu0 0.0
  %950 = vmatmul.mubr.f32.gmra.mrb[0].mxu0 %v880
  %v951 = vpop.f32.mrb[0].mxu0
  %v952 = vadd.f32 %v876, %v951
  %v953 = vpop.f32.mrb[0].mxu0
  %954 = vmatprep.mubr.f32.mxu0 0.0
  %955 = vmatmul.mubr.f32.gmra.mrb[0].mxu0 %v883
  %v956 = vpop.f32.mrb[0].mxu0
  %v957 = vadd.f32 %v876, %v956
  %v958 = vpop.f32.mrb[0].mxu0
  %959 = vdwg.mxu0
  %v961 = vsel %vm878, %v871, 0
  %963 = vmatprep.subr.mxu0 0.0
  %964 = vmatpush1.xpose.msra.mxu0 %v880
  %965 = vmatprep.subr.mxu0 0.0
  %966 = vmatpush1.xpose.msra.mxu0 %v883
  %967 = vmatprep.subr.mxu0 0.0
  %968 = vmatpush1.xpose.msra.mxu0 0.0
  %969 = vmatprep.subr.mxu0 0.0
  %970 = vmatpush1.xpose.msra.mxu0 0.0
  %971 = vmatprep.subr.mxu0 0.0
  %972 = vmatpush1.xpose.msra.mxu0 0.0
  %973 = vmatprep.subr.mxu0 0.0
  %974 = vmatpush1.xpose.msra.mxu0 0.0
  %975 = vmatprep.subr.mxu0 0.0
  %976 = vmatpush1.xpose.msra.mxu0 0.0
  %977 = vmatprep.subr.mxu0 0.0
  %978 = vmatpush1.xpose.msra.mxu0 0.0
  %979 = vmatprep.subr.mxu0 0.0
  %980 = vmatpush1.xpose.msra.mxu0 0.0
  %981 = vmatprep.subr.mxu0 0.0
  %982 = vmatpush1.xpose.msra.mxu0 0.0
  %983 = vmatprep.subr.mxu0 0.0
  %984 = vmatpush1.xpose.msra.mxu0 0.0
  %985 = vmatprep.subr.mxu0 0.0
  %986 = vmatpush1.xpose.msra.mxu0 0.0
  %987 = vmatprep.subr.mxu0 0.0
  %988 = vmatpush1.xpose.msra.mxu0 0.0
  %989 = vmatprep.subr.mxu0 0.0
  %990 = vmatpush1.xpose.msra.mxu0 0.0
  %991 = vmatprep.subr.mxu0 0.0
  %992 = vmatpush1.xpose.msra.mxu0 0.0
  %993 = vmatprep.subr.mxu0 0.0
  %994 = vmatpush1.xpose.msra.mxu0 0.0
  %995 = vmatprep.subr.mxu0 0.0
  %996 = vmatpush1.xpose.msra.mxu0 0.0
  %997 = vmatprep.subr.mxu0 0.0
  %998 = vmatpush1.xpose.msra.mxu0 0.0
  %999 = vmatprep.subr.mxu0 0.0
  %1000 = vmatpush1.xpose.msra.mxu0 0.0
  %1001 = vmatprep.subr.mxu0 0.0
  %1002 = vmatpush1.xpose.msra.mxu0 0.0
  %1003 = vmatprep.subr.mxu0 0.0
  %1004 = vmatpush1.xpose.msra.mxu0 0.0
  %1005 = vmatprep.subr.mxu0 0.0
  %1006 = vmatpush1.xpose.msra.mxu0 0.0
  %1007 = vmatprep.subr.mxu0 0.0
  %1008 = vmatpush1.xpose.msra.mxu0 0.0
  %1009 = vmatprep.subr.mxu0 0.0
  %1010 = vmatpush1.xpose.msra.mxu0 0.0
  %1011 = vmatprep.subr.mxu0 0.0
  %1012 = vmatpush1.xpose.msra.mxu0 0.0
  %1013 = vmatprep.subr.mxu0 0.0
  %1014 = vmatpush1.xpose.msra.mxu0 0.0
  %1015 = vmatprep.subr.mxu0 0.0
  %1016 = vmatpush1.xpose.msra.mxu0 0.0
  %1017 = vmatprep.subr.mxu0 0.0
  %1018 = vmatpush1.xpose.msra.mxu0 0.0
  %1019 = vmatprep.subr.mxu0 0.0
  %1020 = vmatpush1.xpose.msra.mxu0 0.0
  %1021 = vmatprep.subr.mxu0 0.0
  %1022 = vmatpush1.xpose.msra.mxu0 0.0
  %1023 = vmatprep.subr.mxu0 0.0
  %1024 = vmatpush1.xpose.msra.mxu0 0.0
  %1025 = vmatprep.subr.mxu0 0.0
  %1026 = vmatpush1.xpose.msra.mxu0 0.0
  %1027 = vmatprep.mubr.f32.mxu0 0.0
  %1028 = vmatmul.mubr.f32.gmra.mrb[0].mxu0 %v961
  %v1029 = vpop.f32.mrb[0].mxu0
  %v1030 = vadd.f32 0.0, %v1029
  %v1031 = vpop.f32.mrb[0].mxu0
  %1032 = vdwg.mxu0
  %v1033 = vsel %vm204, %v1030, -inf
  %1034 = vmax.xlane.f32.xlu0 %v1033
  %v1035 = vpop.xlane.xlu0 %1034
  %v1036 = vlaneseq
  %v1037 = vshrl.u32 %v1036, 7
  %v1038 = vsub.s32 0, %v1037
  %v1039 = vrot.slane %v1035, %v1038
  %v1040 = vadd.f32 %v952, %v1039
  %v1041 = vadd.f32 %v957, %v1039
  %v1042 = vmul.f32 %v1040, 0.2
  %v1043 = vmul.f32 %v1041, 0.2
  %v1044 = vmax.f32 %v1040, %v1042
  %v1045 = vmax.f32 %v1041, %v1043
  %1047 = vset.pattern.permute.xlu0 68
  %1048 = vperm.xlu0 %1047, %v952
  %v1049 = vpop.permute.xlu0 %1048
  %1052 = vset.pattern.permute.xlu0 68
  %1053 = vperm.xlu0 %1052, %v957
  %v1054 = vpop.permute.xlu0 %1053
  %v1056 = vlaneseq
  %v1057 = vshrl.u32 %v1056, 7
  %v1058 = vsub.s32 0, %v1057
  %v1059 = vrot.slane %v1030, %v1058
  %v1060 = vadd.f32 %v1049, %v1059
  %v1061 = vadd.f32 %v1054, %v1059
  %v1062 = vmul.f32 %v1060, 0.2
  %v1063 = vmul.f32 %v1061, 0.2
  %v1064 = vmax.f32 %v1060, %v1062
  %v1065 = vmax.f32 %v1061, %v1063
  %v1066 = vld [vmem:[%s1] sm:$0xff]
  %v1067 = vld [vmem:[%s1 + $0x8] sm:$0xff]
  %1069 = vset.pattern.permute.xlu0 68
  %1070 = vperm.xlu0 %1069, %v1044
  %v1071 = vpop.permute.xlu0 %1070
  %1074 = vset.pattern.permute.xlu0 68
  %1075 = vperm.xlu0 %1074, %v1045
  %v1076 = vpop.permute.xlu0 %1075
  %v1078 = vsub.f32 %v1064, %v1071
  %v1079 = vsub.f32 %v1065, %v1076
  %v1080 = vmul.f32 %v1078, 1.442695
  %v1081 = vpow.pop %v1080
  %v1082 = vmul.f32 %v1079, 1.442695
  %v1083 = vpow.pop %v1082
  %v1084 = vmul.f32 %v1081, %v1066
  %v1085 = vmul.f32 %v1083, %v1067
  %v1087 = vsel %vm258, %v1084, 0
  %v1090 = vsel %vm258, %v1085, 0
  %1092 = vmatprep.subr.mxu0 0.0
  %1093 = vmatpush1.msra.mxu0 %v952
  %1094 = vmatprep.subr.mxu0 0.0
  %1095 = vmatpush1.msra.mxu0 %v957
  %1096 = vmatprep.subr.mxu0 0.0
  %1097 = vmatpush1.msra.mxu0 0.0
  %1098 = vmatprep.subr.mxu0 0.0
  %1099 = vmatpush1.msra.mxu0 0.0
  %1100 = vmatprep.subr.mxu0 0.0
  %1101 = vmatpush1.msra.mxu0 0.0
  %1102 = vmatprep.subr.mxu0 0.0
  %1103 = vmatpush1.msra.mxu0 0.0
  %1104 = vmatprep.subr.mxu0 0.0
  %1105 = vmatpush1.msra.mxu0 0.0
  %1106 = vmatprep.subr.mxu0 0.0
  %1107 = vmatpush1.msra.mxu0 0.0
  %1108 = vmatprep.subr.mxu0 0.0
  %1109 = vmatpush1.msra.mxu0 0.0
  %1110 = vmatprep.subr.mxu0 0.0
  %1111 = vmatpush1.msra.mxu0 0.0
  %1112 = vmatprep.subr.mxu0 0.0
  %1113 = vmatpush1.msra.mxu0 0.0
  %1114 = vmatprep.subr.mxu0 0.0
  %1115 = vmatpush1.msra.mxu0 0.0
  %1116 = vmatprep.subr.mxu0 0.0
  %1117 = vmatpush1.msra.mxu0 0.0
  %1118 = vmatprep.subr.mxu0 0.0
  %1119 = vmatpush1.msra.mxu0 0.0
  %1120 = vmatprep.subr.mxu0 0.0
  %1121 = vmatpush1.msra.mxu0 0.0
  %1122 = vmatprep.subr.mxu0 0.0
  %1123 = vmatpush1.msra.mxu0 0.0
  %1124 = vmatprep.subr.mxu0 0.0
  %1125 = vmatpush1.msra.mxu0 0.0
  %1126 = vmatprep.subr.mxu0 0.0
  %1127 = vmatpush1.msra.mxu0 0.0
  %1128 = vmatprep.subr.mxu0 0.0
  %1129 = vmatpush1.msra.mxu0 0.0
  %1130 = vmatprep.subr.mxu0 0.0
  %1131 = vmatpush1.msra.mxu0 0.0
  %1132 = vmatprep.subr.mxu0 0.0
  %1133 = vmatpush1.msra.mxu0 0.0
  %1134 = vmatprep.subr.mxu0 0.0
  %1135 = vmatpush1.msra.mxu0 0.0
  %1136 = vmatprep.subr.mxu0 0.0
  %1137 = vmatpush1.msra.mxu0 0.0
  %1138 = vmatprep.subr.mxu0 0.0
  %1139 = vmatpush1.msra.mxu0 0.0
  %1140 = vmatprep.subr.mxu0 0.0
  %1141 = vmatpush1.msra.mxu0 0.0
  %1142 = vmatprep.subr.mxu0 0.0
  %1143 = vmatpush1.msra.mxu0 0.0
  %1144 = vmatprep.subr.mxu0 0.0
  %1145 = vmatpush1.msra.mxu0 0.0
  %1146 = vmatprep.subr.mxu0 0.0
  %1147 = vmatpush1.msra.mxu0 0.0
  %1148 = vmatprep.subr.mxu0 0.0
  %1149 = vmatpush1.msra.mxu0 0.0
  %1150 = vmatprep.subr.mxu0 0.0
  %1151 = vmatpush1.msra.mxu0 0.0
  %1152 = vmatprep.subr.mxu0 0.0
  %1153 = vmatpush1.msra.mxu0 0.0
  %1154 = vmatprep.subr.mxu0 0.0
  %1155 = vmatpush1.msra.mxu0 0.0
  %1156 = vmatprep.mubr.f32.mxu0 0.0
  %1157 = vmatmul.mubr.f32.gmra.mrb[0].mxu0 %v1087
  %v1158 = vpop.f32.mrb[0].mxu0
  %v1159 = vadd.f32 0.0, %v1158
  %v1160 = vpop.f32.mrb[0].mxu0
  %1161 = vmatprep.mubr.f32.mxu0 0.0
  %1162 = vmatmul.mubr.f32.gmra.mrb[0].mxu0 %v1090
  %v1163 = vpop.f32.mrb[0].mxu0
  %v1164 = vadd.f32 0.0, %v1163
  %v1165 = vpop.f32.mrb[0].mxu0
  %1166 = vdwg.mxu0
  %v1167 = vmax.f32 %v1159, 1e-30
  %v1168 = vmax.f32 %v1164, 1e-30
  %v1169 = vrcp.pop %v1167
  %v1170 = vrcp.pop %v1168
  %1172 = vset.pattern.permute.xlu0 16
  %1173 = vperm.xlu0 %1172, %v1169
  %v1174 = vpop.permute.xlu0 %1173
  %1177 = vset.pattern.permute.xlu0 16
  %1178 = vperm.xlu0 %1177, %v1170
  %v1179 = vpop.permute.xlu0 %1178
  %v1181 = vmul.f32 %v1159, %v1174
  %v1182 = vmul.f32 %v1164, %v1179
  %v1183 = vmul.f32 %v1181, 0.01
  %v1184 = vmul.f32 %v1182, 0.01
  %v1185 = vmax.f32 %v1181, %v1183
  %v1186 = vmax.f32 %v1182, %v1184
  %1187 = vst.msk [vmem:[#allocation2] sm:$0xff] %vm258, %v1185
  %1188 = vst.msk [vmem:[#allocation2 + $0x8] sm:$0xff] %vm258, %v1186
  %v1189 = vlaneseq
  %v1190 = vshrl.u32 %v1189, 7
  %v1191 = vsub.s32 1, %v1190
  %v1192 = vrot.slane %v1035, %v1191
  %v1193 = vadd.f32 %v952, %v1192
  %v1194 = vadd.f32 %v957, %v1192
  %v1195 = vmul.f32 %v1193, 0.2
  %v1196 = vmul.f32 %v1194, 0.2
  %v1197 = vmax.f32 %v1193, %v1195
  %v1198 = vmax.f32 %v1194, %v1196
  %1199 = vset.pattern.permute.xlu0 69
  %1200 = vperm.xlu0 %1199, %v952
  %v1201 = vpop.permute.xlu0 %1200
  %1203 = vset.pattern.permute.xlu0 69
  %1204 = vperm.xlu0 %1203, %v957
  %v1205 = vpop.permute.xlu0 %1204
  %v1207 = vlaneseq
  %v1208 = vshrl.u32 %v1207, 7
  %v1209 = vsub.s32 1, %v1208
  %v1210 = vrot.slane %v1030, %v1209
  %v1211 = vadd.f32 %v1201, %v1210
  %v1212 = vadd.f32 %v1205, %v1210
  %v1213 = vmul.f32 %v1211, 0.2
  %v1214 = vmul.f32 %v1212, 0.2
  %v1215 = vmax.f32 %v1211, %v1213
  %v1216 = vmax.f32 %v1212, %v1214
  %v1217 = vld [vmem:[%s1] sm:$0xff]
  %v1218 = vld [vmem:[%s1 + $0x8] sm:$0xff]
  %1220 = vset.pattern.permute.xlu0 69
  %1221 = vperm.xlu0 %1220, %v1197
  %v1222 = vpop.permute.xlu0 %1221
  %1225 = vset.pattern.permute.xlu0 69
  %1226 = vperm.xlu0 %1225, %v1198
  %v1227 = vpop.permute.xlu0 %1226
  %v1229 = vsub.f32 %v1215, %v1222
  %v1230 = vsub.f32 %v1216, %v1227
  %v1231 = vmul.f32 %v1229, 1.442695
  %v1232 = vpow.pop %v1231
  %v1233 = vmul.f32 %v1230, 1.442695
  %v1234 = vpow.pop %v1233
  %v1235 = vmul.f32 %v1232, %v1217
  %v1236 = vmul.f32 %v1234, %v1218
  %1237 = vrot.lane.b32.xlu0 %v952, 111
  %v1238 = vpop.permute.xlu0 %1237
  %1239 = vrot.lane.b32.xlu0 %v957, 111
  %v1240 = vpop.permute.xlu0 %1239
  %v1244 = vsel %vm258, %v1235, 0
  %v1247 = vsel %vm258, %v1236, 0
  %1249 = vmatprep.subr.mxu0 0.0
  %1250 = vmatpush1.msra.mxu0 %v1238
  %1251 = vmatprep.subr.mxu0 0.0
  %1252 = vmatpush1.msra.mxu0 %v1240
  %1253 = vmatprep.subr.mxu0 0.0
  %1254 = vmatpush1.msra.mxu0 0.0
  %1255 = vmatprep.subr.mxu0 0.0
  %1256 = vmatpush1.msra.mxu0 0.0
  %1257 = vmatprep.subr.mxu0 0.0
  %1258 = vmatpush1.msra.mxu0 0.0
  %1259 = vmatprep.subr.mxu0 0.0
  %1260 = vmatpush1.msra.mxu0 0.0
  %1261 = vmatprep.subr.mxu0 0.0
  %1262 = vmatpush1.msra.mxu0 0.0
  %1263 = vmatprep.subr.mxu0 0.0
  %1264 = vmatpush1.msra.mxu0 0.0
  %1265 = vmatprep.subr.mxu0 0.0
  %1266 = vmatpush1.msra.mxu0 0.0
  %1267 = vmatprep.subr.mxu0 0.0
  %1268 = vmatpush1.msra.mxu0 0.0
  %1269 = vmatprep.subr.mxu0 0.0
  %1270 = vmatpush1.msra.mxu0 0.0
  %1271 = vmatprep.subr.mxu0 0.0
  %1272 = vmatpush1.msra.mxu0 0.0
  %1273 = vmatprep.subr.mxu0 0.0
  %1274 = vmatpush1.msra.mxu0 0.0
  %1275 = vmatprep.subr.mxu0 0.0
  %1276 = vmatpush1.msra.mxu0 0.0
  %1277 = vmatprep.subr.mxu0 0.0
  %1278 = vmatpush1.msra.mxu0 0.0
  %1279 = vmatprep.subr.mxu0 0.0
  %1280 = vmatpush1.msra.mxu0 0.0
  %1281 = vmatprep.subr.mxu0 0.0
  %1282 = vmatpush1.msra.mxu0 0.0
  %1283 = vmatprep.subr.mxu0 0.0
  %1284 = vmatpush1.msra.mxu0 0.0
  %1285 = vmatprep.subr.mxu0 0.0
  %1286 = vmatpush1.msra.mxu0 0.0
  %1287 = vmatprep.subr.mxu0 0.0
  %1288 = vmatpush1.msra.mxu0 0.0
  %1289 = vmatprep.subr.mxu0 0.0
  %1290 = vmatpush1.msra.mxu0 0.0
  %1291 = vmatprep.subr.mxu0 0.0
  %1292 = vmatpush1.msra.mxu0 0.0
  %1293 = vmatprep.subr.mxu0 0.0
  %1294 = vmatpush1.msra.mxu0 0.0
  %1295 = vmatprep.subr.mxu0 0.0
  %1296 = vmatpush1.msra.mxu0 0.0
  %1297 = vmatprep.subr.mxu0 0.0
  %1298 = vmatpush1.msra.mxu0 0.0
  %1299 = vmatprep.subr.mxu0 0.0
  %1300 = vmatpush1.msra.mxu0 0.0
  %1301 = vmatprep.subr.mxu0 0.0
  %1302 = vmatpush1.msra.mxu0 0.0
  %1303 = vmatprep.subr.mxu0 0.0
  %1304 = vmatpush1.msra.mxu0 0.0
  %1305 = vmatprep.subr.mxu0 0.0
  %1306 = vmatpush1.msra.mxu0 0.0
  %1307 = vmatprep.subr.mxu0 0.0
  %1308 = vmatpush1.msra.mxu0 0.0
  %1309 = vmatprep.subr.mxu0 0.0
  %1310 = vmatpush1.msra.mxu0 0.0
  %1311 = vmatprep.subr.mxu0 0.0
  %1312 = vmatpush1.msra.mxu0 0.0
  %1313 = vmatprep.mubr.f32.mxu0 0.0
  %1314 = vmatmul.mubr.f32.gmra.mrb[0].mxu0 %v1244
  %v1315 = vpop.f32.mrb[0].mxu0
  %v1316 = vadd.f32 0.0, %v1315
  %v1317 = vpop.f32.mrb[0].mxu0
  %1318 = vmatprep.mubr.f32.mxu0 0.0
  %1319 = vmatmul.mubr.f32.gmra.mrb[0].mxu0 %v1247
  %v1320 = vpop.f32.mrb[0].mxu0
  %v1321 = vadd.f32 0.0, %v1320
  %v1322 = vpop.f32.mrb[0].mxu0
  %1323 = vdwg.mxu0
  %v1324 = vmax.f32 %v1316, 1e-30
  %v1325 = vmax.f32 %v1321, 1e-30
  %v1326 = vrcp.pop %v1324
  %v1327 = vrcp.pop %v1325
  %1329 = vset.pattern.permute.xlu0 16
  %1330 = vperm.xlu0 %1329, %v1326
  %v1331 = vpop.permute.xlu0 %1330
  %1334 = vset.pattern.permute.xlu0 16
  %1335 = vperm.xlu0 %1334, %v1327
  %v1336 = vpop.permute.xlu0 %1335
  %v1338 = vmul.f32 %v1316, %v1331
  %v1339 = vmul.f32 %v1321, %v1336
  %v1340 = vmul.f32 %v1338, 0.01
  %v1341 = vmul.f32 %v1339, 0.01
  %v1342 = vmax.f32 %v1338, %v1340
  %v1343 = vmax.f32 %v1339, %v1341
  %1346 = vrot.lane.b32.xlu0 %v1342, 16
  %v1347 = vpop.permute.xlu0 %1346
  %1348 = vrot.lane.b32.xlu0 %v1343, 16
  %v1349 = vpop.permute.xlu0 %1348
  %1352 = vst.msk [vmem:[#allocation2] sm:$0xff] %vm525, %v1347
  %1353 = vst.msk [vmem:[#allocation2 + $0x8] sm:$0xff] %vm525, %v1349
  %v1354 = vlaneseq
  %v1355 = vshrl.u32 %v1354, 7
  %v1356 = vsub.s32 2, %v1355
  %v1357 = vrot.slane %v1035, %v1356
  %v1358 = vadd.f32 %v952, %v1357
  %v1359 = vadd.f32 %v957, %v1357
  %v1360 = vmul.f32 %v1358, 0.2
  %v1361 = vmul.f32 %v1359, 0.2
  %v1362 = vmax.f32 %v1358, %v1360
  %v1363 = vmax.f32 %v1359, %v1361
  %1364 = vset.pattern.permute.xlu0 70
  %1365 = vperm.xlu0 %1364, %v952
  %v1366 = vpop.permute.xlu0 %1365
  %1368 = vset.pattern.permute.xlu0 70
  %1369 = vperm.xlu0 %1368, %v957
  %v1370 = vpop.permute.xlu0 %1369
  %v1372 = vlaneseq
  %v1373 = vshrl.u32 %v1372, 7
  %v1374 = vsub.s32 2, %v1373
  %v1375 = vrot.slane %v1030, %v1374
  %v1376 = vadd.f32 %v1366, %v1375
  %v1377 = vadd.f32 %v1370, %v1375
  %v1378 = vmul.f32 %v1376, 0.2
  %v1379 = vmul.f32 %v1377, 0.2
  %v1380 = vmax.f32 %v1376, %v1378
  %v1381 = vmax.f32 %v1377, %v1379
  %v1382 = vld [vmem:[%s1] sm:$0xff]
  %v1383 = vld [vmem:[%s1 + $0x8] sm:$0xff]
  %1385 = vset.pattern.permute.xlu0 70
  %1386 = vperm.xlu0 %1385, %v1362
  %v1387 = vpop.permute.xlu0 %1386
  %1390 = vset.pattern.permute.xlu0 70
  %1391 = vperm.xlu0 %1390, %v1363
  %v1392 = vpop.permute.xlu0 %1391
  %v1394 = vsub.f32 %v1380, %v1387
  %v1395 = vsub.f32 %v1381, %v1392
  %v1396 = vmul.f32 %v1394, 1.442695
  %v1397 = vpow.pop %v1396
  %v1398 = vmul.f32 %v1395, 1.442695
  %v1399 = vpow.pop %v1398
  %v1400 = vmul.f32 %v1397, %v1382
  %v1401 = vmul.f32 %v1399, %v1383
  %1402 = vrot.lane.b32.xlu0 %v952, 94
  %v1403 = vpop.permute.xlu0 %1402
  %1404 = vrot.lane.b32.xlu0 %v957, 94
  %v1405 = vpop.permute.xlu0 %1404
  %v1409 = vsel %vm258, %v1400, 0
  %v1412 = vsel %vm258, %v1401, 0
  %1414 = vmatprep.subr.mxu0 0.0
  %1415 = vmatpush1.msra.mxu0 %v1403
  %1416 = vmatprep.subr.mxu0 0.0
  %1417 = vmatpush1.msra.mxu0 %v1405
  %1418 = vmatprep.subr.mxu0 0.0
  %1419 = vmatpush1.msra.mxu0 0.0
  %1420 = vmatprep.subr.mxu0 0.0
  %1421 = vmatpush1.msra.mxu0 0.0
  %1422 = vmatprep.subr.mxu0 0.0
  %1423 = vmatpush1.msra.mxu0 0.0
  %1424 = vmatprep.subr.mxu0 0.0
  %1425 = vmatpush1.msra.mxu0 0.0
  %1426 = vmatprep.subr.mxu0 0.0
  %1427 = vmatpush1.msra.mxu0 0.0
  %1428 = vmatprep.subr.mxu0 0.0
  %1429 = vmatpush1.msra.mxu0 0.0
  %1430 = vmatprep.subr.mxu0 0.0
  %1431 = vmatpush1.msra.mxu0 0.0
  %1432 = vmatprep.subr.mxu0 0.0
  %1433 = vmatpush1.msra.mxu0 0.0
  %1434 = vmatprep.subr.mxu0 0.0
  %1435 = vmatpush1.msra.mxu0 0.0
  %1436 = vmatprep.subr.mxu0 0.0
  %1437 = vmatpush1.msra.mxu0 0.0
  %1438 = vmatprep.subr.mxu0 0.0
  %1439 = vmatpush1.msra.mxu0 0.0
  %1440 = vmatprep.subr.mxu0 0.0
  %1441 = vmatpush1.msra.mxu0 0.0
  %1442 = vmatprep.subr.mxu0 0.0
  %1443 = vmatpush1.msra.mxu0 0.0
  %1444 = vmatprep.subr.mxu0 0.0
  %1445 = vmatpush1.msra.mxu0 0.0
  %1446 = vmatprep.subr.mxu0 0.0
  %1447 = vmatpush1.msra.mxu0 0.0
  %1448 = vmatprep.subr.mxu0 0.0
  %1449 = vmatpush1.msra.mxu0 0.0
  %1450 = vmatprep.subr.mxu0 0.0
  %1451 = vmatpush1.msra.mxu0 0.0
  %1452 = vmatprep.subr.mxu0 0.0
  %1453 = vmatpush1.msra.mxu0 0.0
  %1454 = vmatprep.subr.mxu0 0.0
  %1455 = vmatpush1.msra.mxu0 0.0
  %1456 = vmatprep.subr.mxu0 0.0
  %1457 = vmatpush1.msra.mxu0 0.0
  %1458 = vmatprep.subr.mxu0 0.0
  %1459 = vmatpush1.msra.mxu0 0.0
  %1460 = vmatprep.subr.mxu0 0.0
  %1461 = vmatpush1.msra.mxu0 0.0
  %1462 = vmatprep.subr.mxu0 0.0
  %1463 = vmatpush1.msra.mxu0 0.0
  %1464 = vmatprep.subr.mxu0 0.0
  %1465 = vmatpush1.msra.mxu0 0.0
  %1466 = vmatprep.subr.mxu0 0.0
  %1467 = vmatpush1.msra.mxu0 0.0
  %1468 = vmatprep.subr.mxu0 0.0
  %1469 = vmatpush1.msra.mxu0 0.0
  %1470 = vmatprep.subr.mxu0 0.0
  %1471 = vmatpush1.msra.mxu0 0.0
  %1472 = vmatprep.subr.mxu0 0.0
  %1473 = vmatpush1.msra.mxu0 0.0
  %1474 = vmatprep.subr.mxu0 0.0
  %1475 = vmatpush1.msra.mxu0 0.0
  %1476 = vmatprep.subr.mxu0 0.0
  %1477 = vmatpush1.msra.mxu0 0.0
  %1478 = vmatprep.mubr.f32.mxu0 0.0
  %1479 = vmatmul.mubr.f32.gmra.mrb[0].mxu0 %v1409
  %v1480 = vpop.f32.mrb[0].mxu0
  %v1481 = vadd.f32 0.0, %v1480
  %v1482 = vpop.f32.mrb[0].mxu0
  %1483 = vmatprep.mubr.f32.mxu0 0.0
  %1484 = vmatmul.mubr.f32.gmra.mrb[0].mxu0 %v1412
  %v1485 = vpop.f32.mrb[0].mxu0
  %v1486 = vadd.f32 0.0, %v1485
  %v1487 = vpop.f32.mrb[0].mxu0
  %1488 = vdwg.mxu0
  %v1489 = vmax.f32 %v1481, 1e-30
  %v1490 = vmax.f32 %v1486, 1e-30
  %v1491 = vrcp.pop %v1489
  %v1492 = vrcp.pop %v1490
  %1494 = vset.pattern.permute.xlu0 16
  %1495 = vperm.xlu0 %1494, %v1491
  %v1496 = vpop.permute.xlu0 %1495
  %1499 = vset.pattern.permute.xlu0 16
  %1500 = vperm.xlu0 %1499, %v1492
  %v1501 = vpop.permute.xlu0 %1500
  %v1503 = vmul.f32 %v1481, %v1496
  %v1504 = vmul.f32 %v1486, %v1501
  %v1505 = vmul.f32 %v1503, 0.01
  %v1506 = vmul.f32 %v1504, 0.01
  %v1507 = vmax.f32 %v1503, %v1505
  %v1508 = vmax.f32 %v1504, %v1506
  %1511 = vrot.lane.b32.xlu0 %v1507, 32
  %v1512 = vpop.permute.xlu0 %1511
  %1513 = vrot.lane.b32.xlu0 %v1508, 32
  %v1514 = vpop.permute.xlu0 %1513
  %1517 = vst.msk [vmem:[#allocation2] sm:$0xff] %vm691, %v1512
  %1518 = vst.msk [vmem:[#allocation2 + $0x8] sm:$0xff] %vm691, %v1514
  %v1519 = vlaneseq
  %v1520 = vshrl.u32 %v1519, 7
  %v1521 = vsub.s32 3, %v1520
  %v1522 = vrot.slane %v1035, %v1521
  %v1523 = vadd.f32 %v952, %v1522
  %v1524 = vadd.f32 %v957, %v1522
  %v1525 = vmul.f32 %v1523, 0.2
  %v1526 = vmul.f32 %v1524, 0.2
  %v1527 = vmax.f32 %v1523, %v1525
  %v1528 = vmax.f32 %v1524, %v1526
  %1529 = vset.pattern.permute.xlu0 71
  %1530 = vperm.xlu0 %1529, %v952
  %v1531 = vpop.permute.xlu0 %1530
  %1533 = vset.pattern.permute.xlu0 71
  %1534 = vperm.xlu0 %1533, %v957
  %v1535 = vpop.permute.xlu0 %1534
  %v1537 = vlaneseq
  %v1538 = vshrl.u32 %v1537, 7
  %v1539 = vsub.s32 3, %v1538
  %v1540 = vrot.slane %v1030, %v1539
  %v1541 = vadd.f32 %v1531, %v1540
  %v1542 = vadd.f32 %v1535, %v1540
  %v1543 = vmul.f32 %v1541, 0.2
  %v1544 = vmul.f32 %v1542, 0.2
  %v1545 = vmax.f32 %v1541, %v1543
  %v1546 = vmax.f32 %v1542, %v1544
  %v1547 = vld [vmem:[%s1] sm:$0xff]
  %v1548 = vld [vmem:[%s1 + $0x8] sm:$0xff]
  %1550 = vset.pattern.permute.xlu0 71
  %1551 = vperm.xlu0 %1550, %v1527
  %v1552 = vpop.permute.xlu0 %1551
  %1555 = vset.pattern.permute.xlu0 71
  %1556 = vperm.xlu0 %1555, %v1528
  %v1557 = vpop.permute.xlu0 %1556
  %v1559 = vsub.f32 %v1545, %v1552
  %v1560 = vsub.f32 %v1546, %v1557
  %v1561 = vmul.f32 %v1559, 1.442695
  %v1562 = vpow.pop %v1561
  %v1563 = vmul.f32 %v1560, 1.442695
  %v1564 = vpow.pop %v1563
  %v1565 = vmul.f32 %v1562, %v1547
  %v1566 = vmul.f32 %v1564, %v1548
  %1567 = vrot.lane.b32.xlu0 %v952, 77
  %v1568 = vpop.permute.xlu0 %1567
  %1569 = vrot.lane.b32.xlu0 %v957, 77
  %v1570 = vpop.permute.xlu0 %1569
  %v1574 = vsel %vm258, %v1565, 0
  %v1577 = vsel %vm258, %v1566, 0
  %1579 = vmatprep.subr.mxu0 0.0
  %1580 = vmatpush1.msra.mxu0 %v1568
  %1581 = vmatprep.subr.mxu0 0.0
  %1582 = vmatpush1.msra.mxu0 %v1570
  %1583 = vmatprep.subr.mxu0 0.0
  %1584 = vmatpush1.msra.mxu0 0.0
  %1585 = vmatprep.subr.mxu0 0.0
  %1586 = vmatpush1.msra.mxu0 0.0
  %1587 = vmatprep.subr.mxu0 0.0
  %1588 = vmatpush1.msra.mxu0 0.0
  %1589 = vmatprep.subr.mxu0 0.0
  %1590 = vmatpush1.msra.mxu0 0.0
  %1591 = vmatprep.subr.mxu0 0.0
  %1592 = vmatpush1.msra.mxu0 0.0
  %1593 = vmatprep.subr.mxu0 0.0
  %1594 = vmatpush1.msra.mxu0 0.0
  %1595 = vmatprep.subr.mxu0 0.0
  %1596 = vmatpush1.msra.mxu0 0.0
  %1597 = vmatprep.subr.mxu0 0.0
  %1598 = vmatpush1.msra.mxu0 0.0
  %1599 = vmatprep.subr.mxu0 0.0
  %1600 = vmatpush1.msra.mxu0 0.0
  %1601 = vmatprep.subr.mxu0 0.0
  %1602 = vmatpush1.msra.mxu0 0.0
  %1603 = vmatprep.subr.mxu0 0.0
  %1604 = vmatpush1.msra.mxu0 0.0
  %1605 = vmatprep.subr.mxu0 0.0
  %1606 = vmatpush1.msra.mxu0 0.0
  %1607 = vmatprep.subr.mxu0 0.0
  %1608 = vmatpush1.msra.mxu0 0.0
  %1609 = vmatprep.subr.mxu0 0.0
  %1610 = vmatpush1.msra.mxu0 0.0
  %1611 = vmatprep.subr.mxu0 0.0
  %1612 = vmatpush1.msra.mxu0 0.0
  %1613 = vmatprep.subr.mxu0 0.0
  %1614 = vmatpush1.msra.mxu0 0.0
  %1615 = vmatprep.subr.mxu0 0.0
  %1616 = vmatpush1.msra.mxu0 0.0
  %1617 = vmatprep.subr.mxu0 0.0
  %1618 = vmatpush1.msra.mxu0 0.0
  %1619 = vmatprep.subr.mxu0 0.0
  %1620 = vmatpush1.msra.mxu0 0.0
  %1621 = vmatprep.subr.mxu0 0.0
  %1622 = vmatpush1.msra.mxu0 0.0
  %1623 = vmatprep.subr.mxu0 0.0
  %1624 = vmatpush1.msra.mxu0 0.0
  %1625 = vmatprep.subr.mxu0 0.0
  %1626 = vmatpush1.msra.mxu0 0.0
  %1627 = vmatprep.subr.mxu0 0.0
  %1628 = vmatpush1.msra.mxu0 0.0
  %1629 = vmatprep.subr.mxu0 0.0
  %1630 = vmatpush1.msra.mxu0 0.0
  %1631 = vmatprep.subr.mxu0 0.0
  %1632 = vmatpush1.msra.mxu0 0.0
  %1633 = vmatprep.subr.mxu0 0.0
  %1634 = vmatpush1.msra.mxu0 0.0
  %1635 = vmatprep.subr.mxu0 0.0
  %1636 = vmatpush1.msra.mxu0 0.0
  %1637 = vmatprep.subr.mxu0 0.0
  %1638 = vmatpush1.msra.mxu0 0.0
  %1639 = vmatprep.subr.mxu0 0.0
  %1640 = vmatpush1.msra.mxu0 0.0
  %1641 = vmatprep.subr.mxu0 0.0
  %1642 = vmatpush1.msra.mxu0 0.0
  %1643 = vmatprep.mubr.f32.mxu0 0.0
  %1644 = vmatmul.mubr.f32.gmra.mrb[0].mxu0 %v1574
  %v1645 = vpop.f32.mrb[0].mxu0
  %v1646 = vadd.f32 0.0, %v1645
  %v1647 = vpop.f32.mrb[0].mxu0
  %1648 = vmatprep.mubr.f32.mxu0 0.0
  %1649 = vmatmul.mubr.f32.gmra.mrb[0].mxu0 %v1577
  %v1650 = vpop.f32.mrb[0].mxu0
  %v1651 = vadd.f32 0.0, %v1650
  %v1652 = vpop.f32.mrb[0].mxu0
  %1653 = vdwg.mxu0
  %v1654 = vmax.f32 %v1646, 1e-30
  %v1655 = vmax.f32 %v1651, 1e-30
  %v1656 = vrcp.pop %v1654
  %v1657 = vrcp.pop %v1655
  %1659 = vset.pattern.permute.xlu0 16
  %1660 = vperm.xlu0 %1659, %v1656
  %v1661 = vpop.permute.xlu0 %1660
  %1664 = vset.pattern.permute.xlu0 16
  %1665 = vperm.xlu0 %1664, %v1657
  %v1666 = vpop.permute.xlu0 %1665
  %v1668 = vmul.f32 %v1646, %v1661
  %v1669 = vmul.f32 %v1651, %v1666
  %v1670 = vmul.f32 %v1668, 0.01
  %v1671 = vmul.f32 %v1669, 0.01
  %v1672 = vmax.f32 %v1668, %v1670
  %v1673 = vmax.f32 %v1669, %v1671
  %1676 = vrot.lane.b32.xlu0 %v1672, 48
  %v1677 = vpop.permute.xlu0 %1676
  %1678 = vrot.lane.b32.xlu0 %v1673, 48
  %v1679 = vpop.permute.xlu0 %1678
  %1682 = vst.msk [vmem:[#allocation2] sm:$0xff] %vm857, %v1677
  %1683 = vst.msk [vmem:[#allocation2 + $0x8] sm:$0xff] %vm857, %v1679
  %v1684 = vld [vmem:[#allocation2] sm:$0xff]
  %v1685 = vld [vmem:[#allocation2 + $0x8] sm:$0xff]
  %v1686 = vld [vmem:[%s8] sm:$0xff]
  %v1687 = vld [vmem:[%s8 + $0x8] sm:$0xff]
  %v1688 = vld [vmem:[%s8 + $0x10] sm:$0xff]
  %v1689 = vld [vmem:[%s8 + $0x18] sm:$0xff]
  %v1690 = vld [vmem:[%s8 + $0x20] sm:$0xff]
  %v1691 = vld [vmem:[%s8 + $0x28] sm:$0xff]
  %v1692 = vld [vmem:[%s8 + $0x30] sm:$0xff]
  %v1693 = vld [vmem:[%s8 + $0x38] sm:$0xff]
  %v1694 = vld [vmem:[%s9] sm:$0x1]
  %v1695 = vld [vmem:[%s10] sm:$0x3]
  %v1697 = vlaneseq
  %v1698 = vshrl.u32 %v1697, 7
  %v1699 = vsub.s32 0, %v1698
  %v1700 = vrot.slane %v1694, %v1699
  %v1703 = vsel %vm878, %v1684, 0
  %v1706 = vsel %vm878, %v1685, 0
  %1708 = vmatprep.subr.mxu0 0.0
  %1709 = vmatpush1.msra.mxu0 %v1686
  %1710 = vmatprep.subr.mxu0 0.0
  %1711 = vmatpush1.msra.mxu0 %v1687
  %1712 = vmatprep.subr.mxu0 0.0
  %1713 = vmatpush1.msra.mxu0 %v1688
  %1714 = vmatprep.subr.mxu0 0.0
  %1715 = vmatpush1.msra.mxu0 %v1689
  %1716 = vmatprep.subr.mxu0 0.0
  %1717 = vmatpush1.msra.mxu0 %v1690
  %1718 = vmatprep.subr.mxu0 0.0
  %1719 = vmatpush1.msra.mxu0 %v1691
  %1720 = vmatprep.subr.mxu0 0.0
  %1721 = vmatpush1.msra.mxu0 %v1692
  %1722 = vmatprep.subr.mxu0 0.0
  %1723 = vmatpush1.msra.mxu0 %v1693
  %1724 = vmatprep.subr.mxu0 0.0
  %1725 = vmatpush1.msra.mxu0 0.0
  %1726 = vmatprep.subr.mxu0 0.0
  %1727 = vmatpush1.msra.mxu0 0.0
  %1728 = vmatprep.subr.mxu0 0.0
  %1729 = vmatpush1.msra.mxu0 0.0
  %1730 = vmatprep.subr.mxu0 0.0
  %1731 = vmatpush1.msra.mxu0 0.0
  %1732 = vmatprep.subr.mxu0 0.0
  %1733 = vmatpush1.msra.mxu0 0.0
  %1734 = vmatprep.subr.mxu0 0.0
  %1735 = vmatpush1.msra.mxu0 0.0
  %1736 = vmatprep.subr.mxu0 0.0
  %1737 = vmatpush1.msra.mxu0 0.0
  %1738 = vmatprep.subr.mxu0 0.0
  %1739 = vmatpush1.msra.mxu0 0.0
  %1740 = vmatprep.subr.mxu0 0.0
  %1741 = vmatpush1.msra.mxu0 0.0
  %1742 = vmatprep.subr.mxu0 0.0
  %1743 = vmatpush1.msra.mxu0 0.0
  %1744 = vmatprep.subr.mxu0 0.0
  %1745 = vmatpush1.msra.mxu0 0.0
  %1746 = vmatprep.subr.mxu0 0.0
  %1747 = vmatpush1.msra.mxu0 0.0
  %1748 = vmatprep.subr.mxu0 0.0
  %1749 = vmatpush1.msra.mxu0 0.0
  %1750 = vmatprep.subr.mxu0 0.0
  %1751 = vmatpush1.msra.mxu0 0.0
  %1752 = vmatprep.subr.mxu0 0.0
  %1753 = vmatpush1.msra.mxu0 0.0
  %1754 = vmatprep.subr.mxu0 0.0
  %1755 = vmatpush1.msra.mxu0 0.0
  %1756 = vmatprep.subr.mxu0 0.0
  %1757 = vmatpush1.msra.mxu0 0.0
  %1758 = vmatprep.subr.mxu0 0.0
  %1759 = vmatpush1.msra.mxu0 0.0
  %1760 = vmatprep.subr.mxu0 0.0
  %1761 = vmatpush1.msra.mxu0 0.0
  %1762 = vmatprep.subr.mxu0 0.0
  %1763 = vmatpush1.msra.mxu0 0.0
  %1764 = vmatprep.subr.mxu0 0.0
  %1765 = vmatpush1.msra.mxu0 0.0
  %1766 = vmatprep.subr.mxu0 0.0
  %1767 = vmatpush1.msra.mxu0 0.0
  %1768 = vmatprep.subr.mxu0 0.0
  %1769 = vmatpush1.msra.mxu0 0.0
  %1770 = vmatprep.subr.mxu0 0.0
  %1771 = vmatpush1.msra.mxu0 0.0
  %1772 = vmatprep.mubr.f32.mxu0 0.0
  %1773 = vmatmul.mubr.f32.gmra.mrb[0].mxu0 %v1703
  %v1774 = vpop.f32.mrb[0].mxu0
  %v1775 = vadd.f32 %v1700, %v1774
  %v1776 = vpop.f32.mrb[0].mxu0
  %1777 = vmatprep.mubr.f32.mxu0 0.0
  %1778 = vmatmul.mubr.f32.gmra.mrb[0].mxu0 %v1706
  %v1779 = vpop.f32.mrb[0].mxu0
  %v1780 = vadd.f32 %v1700, %v1779
  %v1781 = vpop.f32.mrb[0].mxu0
  %1782 = vdwg.mxu0
  %v1784 = vsel %vm878, %v1695, 0
  %1786 = vmatprep.subr.mxu0 0.0
  %1787 = vmatpush1.xpose.msra.mxu0 %v1703
  %1788 = vmatprep.subr.mxu0 0.0
  %1789 = vmatpush1.xpose.msra.mxu0 %v1706
  %1790 = vmatprep.subr.mxu0 0.0
  %1791 = vmatpush1.xpose.msra.mxu0 0.0
  %1792 = vmatprep.subr.mxu0 0.0
  %1793 = vmatpush1.xpose.msra.mxu0 0.0
  %1794 = vmatprep.subr.mxu0 0.0
  %1795 = vmatpush1.xpose.msra.mxu0 0.0
  %1796 = vmatprep.subr.mxu0 0.0
  %1797 = vmatpush1.xpose.msra.mxu0 0.0
  %1798 = vmatprep.subr.mxu0 0.0
  %1799 = vmatpush1.xpose.msra.mxu0 0.0
  %1800 = vmatprep.subr.mxu0 0.0
  %1801 = vmatpush1.xpose.msra.mxu0 0.0
  %1802 = vmatprep.subr.mxu0 0.0
  %1803 = vmatpush1.xpose.msra.mxu0 0.0
  %1804 = vmatprep.subr.mxu0 0.0
  %1805 = vmatpush1.xpose.msra.mxu0 0.0
  %1806 = vmatprep.subr.mxu0 0.0
  %1807 = vmatpush1.xpose.msra.mxu0 0.0
  %1808 = vmatprep.subr.mxu0 0.0
  %1809 = vmatpush1.xpose.msra.mxu0 0.0
  %1810 = vmatprep.subr.mxu0 0.0
  %1811 = vmatpush1.xpose.msra.mxu0 0.0
  %1812 = vmatprep.subr.mxu0 0.0
  %1813 = vmatpush1.xpose.msra.mxu0 0.0
  %1814 = vmatprep.subr.mxu0 0.0
  %1815 = vmatpush1.xpose.msra.mxu0 0.0
  %1816 = vmatprep.subr.mxu0 0.0
  %1817 = vmatpush1.xpose.msra.mxu0 0.0
  %1818 = vmatprep.subr.mxu0 0.0
  %1819 = vmatpush1.xpose.msra.mxu0 0.0
  %1820 = vmatprep.subr.mxu0 0.0
  %1821 = vmatpush1.xpose.msra.mxu0 0.0
  %1822 = vmatprep.subr.mxu0 0.0
  %1823 = vmatpush1.xpose.msra.mxu0 0.0
  %1824 = vmatprep.subr.mxu0 0.0
  %1825 = vmatpush1.xpose.msra.mxu0 0.0
  %1826 = vmatprep.subr.mxu0 0.0
  %1827 = vmatpush1.xpose.msra.mxu0 0.0
  %1828 = vmatprep.subr.mxu0 0.0
  %1829 = vmatpush1.xpose.msra.mxu0 0.0
  %1830 = vmatprep.subr.mxu0 0.0
  %1831 = vmatpush1.xpose.msra.mxu0 0.0
  %1832 = vmatprep.subr.mxu0 0.0
  %1833 = vmatpush1.xpose.msra.mxu0 0.0
  %1834 = vmatprep.subr.mxu0 0.0
  %1835 = vmatpush1.xpose.msra.mxu0 0.0
  %1836 = vmatprep.subr.mxu0 0.0
  %1837 = vmatpush1.xpose.msra.mxu0 0.0
  %1838 = vmatprep.subr.mxu0 0.0
  %1839 = vmatpush1.xpose.msra.mxu0 0.0
  %1840 = vmatprep.subr.mxu0 0.0
  %1841 = vmatpush1.xpose.msra.mxu0 0.0
  %1842 = vmatprep.subr.mxu0 0.0
  %1843 = vmatpush1.xpose.msra.mxu0 0.0
  %1844 = vmatprep.subr.mxu0 0.0
  %1845 = vmatpush1.xpose.msra.mxu0 0.0
  %1846 = vmatprep.subr.mxu0 0.0
  %1847 = vmatpush1.xpose.msra.mxu0 0.0
  %1848 = vmatprep.subr.mxu0 0.0
  %1849 = vmatpush1.xpose.msra.mxu0 0.0
  %1850 = vmatprep.mubr.f32.mxu0 0.0
  %1851 = vmatmul.mubr.f32.gmra.mrb[0].mxu0 %v1784
  %v1852 = vpop.f32.mrb[0].mxu0
  %v1853 = vadd.f32 0.0, %v1852
  %v1854 = vpop.f32.mrb[0].mxu0
  %1855 = vdwg.mxu0
  %vm1856 = vcmask 123904
  %v1857 = vsel %vm1856, %v1853, -inf
  %1858 = vmax.xlane.f32.xlu0 %v1857
  %v1859 = vpop.xlane.xlu0 %1858
  %v1860 = vlaneseq
  %v1861 = vshrl.u32 %v1860, 7
  %v1862 = vsub.s32 0, %v1861
  %v1863 = vrot.slane %v1859, %v1862
  %v1864 = vadd.f32 %v1775, %v1863
  %v1865 = vadd.f32 %v1780, %v1863
  %v1866 = vmul.f32 %v1864, 0.2
  %v1867 = vmul.f32 %v1865, 0.2
  %v1868 = vmax.f32 %v1864, %v1866
  %v1869 = vmax.f32 %v1865, %v1867
  %1871 = vset.pattern.permute.xlu0 14
  %1872 = vperm.xlu0 %1871, %v1775
  %v1873 = vpop.permute.xlu0 %1872
  %1876 = vset.pattern.permute.xlu0 14
  %1877 = vperm.xlu0 %1876, %v1780
  %v1878 = vpop.permute.xlu0 %1877
  %v1880 = vlaneseq
  %v1881 = vshrl.u32 %v1880, 7
  %v1882 = vsub.s32 0, %v1881
  %v1883 = vrot.slane %v1853, %v1882
  %v1884 = vadd.f32 %v1873, %v1883
  %v1885 = vadd.f32 %v1878, %v1883
  %v1886 = vmul.f32 %v1884, 0.2
  %v1887 = vmul.f32 %v1885, 0.2
  %v1888 = vmax.f32 %v1884, %v1886
  %v1889 = vmax.f32 %v1885, %v1887
  %v1890 = vld [vmem:[%s1] sm:$0xff]
  %v1891 = vld [vmem:[%s1 + $0x8] sm:$0xff]
  %1893 = vset.pattern.permute.xlu0 14
  %1894 = vperm.xlu0 %1893, %v1868
  %v1895 = vpop.permute.xlu0 %1894
  %1898 = vset.pattern.permute.xlu0 14
  %1899 = vperm.xlu0 %1898, %v1869
  %v1900 = vpop.permute.xlu0 %1899
  %v1902 = vsub.f32 %v1888, %v1895
  %v1903 = vsub.f32 %v1889, %v1900
  %v1904 = vmul.f32 %v1902, 1.442695
  %v1905 = vpow.pop %v1904
  %v1906 = vmul.f32 %v1903, 1.442695
  %v1907 = vpow.pop %v1906
  %v1908 = vmul.f32 %v1905, %v1890
  %v1909 = vmul.f32 %v1907, %v1891
  %v1911 = vsel %vm258, %v1908, 0
  %v1914 = vsel %vm258, %v1909, 0
  %1916 = vmatprep.subr.mxu0 0.0
  %1917 = vmatpush1.msra.mxu0 %v1775
  %1918 = vmatprep.subr.mxu0 0.0
  %1919 = vmatpush1.msra.mxu0 %v1780
  %1920 = vmatprep.subr.mxu0 0.0
  %1921 = vmatpush1.msra.mxu0 0.0
  %1922 = vmatprep.subr.mxu0 0.0
  %1923 = vmatpush1.msra.mxu0 0.0
  %1924 = vmatprep.subr.mxu0 0.0
  %1925 = vmatpush1.msra.mxu0 0.0
  %1926 = vmatprep.subr.mxu0 0.0
  %1927 = vmatpush1.msra.mxu0 0.0
  %1928 = vmatprep.subr.mxu0 0.0
  %1929 = vmatpush1.msra.mxu0 0.0
  %1930 = vmatprep.subr.mxu0 0.0
  %1931 = vmatpush1.msra.mxu0 0.0
  %1932 = vmatprep.subr.mxu0 0.0
  %1933 = vmatpush1.msra.mxu0 0.0
  %1934 = vmatprep.subr.mxu0 0.0
  %1935 = vmatpush1.msra.mxu0 0.0
  %1936 = vmatprep.subr.mxu0 0.0
  %1937 = vmatpush1.msra.mxu0 0.0
  %1938 = vmatprep.subr.mxu0 0.0
  %1939 = vmatpush1.msra.mxu0 0.0
  %1940 = vmatprep.subr.mxu0 0.0
  %1941 = vmatpush1.msra.mxu0 0.0
  %1942 = vmatprep.subr.mxu0 0.0
  %1943 = vmatpush1.msra.mxu0 0.0
  %1944 = vmatprep.subr.mxu0 0.0
  %1945 = vmatpush1.msra.mxu0 0.0
  %1946 = vmatprep.subr.mxu0 0.0
  %1947 = vmatpush1.msra.mxu0 0.0
  %1948 = vmatprep.subr.mxu0 0.0
  %1949 = vmatpush1.msra.mxu0 0.0
  %1950 = vmatprep.subr.mxu0 0.0
  %1951 = vmatpush1.msra.mxu0 0.0
  %1952 = vmatprep.subr.mxu0 0.0
  %1953 = vmatpush1.msra.mxu0 0.0
  %1954 = vmatprep.subr.mxu0 0.0
  %1955 = vmatpush1.msra.mxu0 0.0
  %1956 = vmatprep.subr.mxu0 0.0
  %1957 = vmatpush1.msra.mxu0 0.0
  %1958 = vmatprep.subr.mxu0 0.0
  %1959 = vmatpush1.msra.mxu0 0.0
  %1960 = vmatprep.subr.mxu0 0.0
  %1961 = vmatpush1.msra.mxu0 0.0
  %1962 = vmatprep.subr.mxu0 0.0
  %1963 = vmatpush1.msra.mxu0 0.0
  %1964 = vmatprep.subr.mxu0 0.0
  %1965 = vmatpush1.msra.mxu0 0.0
  %1966 = vmatprep.subr.mxu0 0.0
  %1967 = vmatpush1.msra.mxu0 0.0
  %1968 = vmatprep.subr.mxu0 0.0
  %1969 = vmatpush1.msra.mxu0 0.0
  %1970 = vmatprep.subr.mxu0 0.0
  %1971 = vmatpush1.msra.mxu0 0.0
  %1972 = vmatprep.subr.mxu0 0.0
  %1973 = vmatpush1.msra.mxu0 0.0
  %1974 = vmatprep.subr.mxu0 0.0
  %1975 = vmatpush1.msra.mxu0 0.0
  %1976 = vmatprep.subr.mxu0 0.0
  %1977 = vmatpush1.msra.mxu0 0.0
  %1978 = vmatprep.subr.mxu0 0.0
  %1979 = vmatpush1.msra.mxu0 0.0
  %1980 = vmatprep.mubr.f32.mxu0 0.0
  %1981 = vmatmul.mubr.f32.gmra.mrb[0].mxu0 %v1911
  %v1982 = vpop.f32.mrb[0].mxu0
  %v1983 = vadd.f32 0.0, %v1982
  %v1984 = vpop.f32.mrb[0].mxu0
  %1985 = vmatprep.mubr.f32.mxu0 0.0
  %1986 = vmatmul.mubr.f32.gmra.mrb[0].mxu0 %v1914
  %v1987 = vpop.f32.mrb[0].mxu0
  %v1988 = vadd.f32 0.0, %v1987
  %v1989 = vpop.f32.mrb[0].mxu0
  %1990 = vdwg.mxu0
  %v1991 = vmax.f32 %v1983, 1e-30
  %v1992 = vmax.f32 %v1988, 1e-30
  %v1993 = vrcp.pop %v1991
  %v1994 = vrcp.pop %v1992
  %1996 = vset.pattern.permute.xlu0 6
  %1997 = vperm.xlu0 %1996, %v1993
  %v1998 = vpop.permute.xlu0 %1997
  %2001 = vset.pattern.permute.xlu0 6
  %2002 = vperm.xlu0 %2001, %v1994
  %v2003 = vpop.permute.xlu0 %2002
  %v2005 = vmul.f32 %v1983, %v1998
  %v2006 = vmul.f32 %v1988, %v2003
  %v2007 = vmul.f32 %v2005, 0.01
  %v2008 = vmul.f32 %v2006, 0.01
  %v2009 = vmax.f32 %v2005, %v2007
  %v2010 = vmax.f32 %v2006, %v2008
  %v2011 = vlaneseq
  %v2012 = vshrl.u32 %v2011, 7
  %v2013 = vsub.s32 1, %v2012
  %v2014 = vrot.slane %v1859, %v2013
  %v2015 = vadd.f32 %v1775, %v2014
  %v2016 = vadd.f32 %v1780, %v2014
  %v2017 = vmul.f32 %v2015, 0.2
  %v2018 = vmul.f32 %v2016, 0.2
  %v2019 = vmax.f32 %v2015, %v2017
  %v2020 = vmax.f32 %v2016, %v2018
  %2021 = vset.pattern.permute.xlu0 15
  %2022 = vperm.xlu0 %2021, %v1775
  %v2023 = vpop.permute.xlu0 %2022
  %2025 = vset.pattern.permute.xlu0 15
  %2026 = vperm.xlu0 %2025, %v1780
  %v2027 = vpop.permute.xlu0 %2026
  %v2029 = vlaneseq
  %v2030 = vshrl.u32 %v2029, 7
  %v2031 = vsub.s32 1, %v2030
  %v2032 = vrot.slane %v1853, %v2031
  %v2033 = vadd.f32 %v2023, %v2032
  %v2034 = vadd.f32 %v2027, %v2032
  %v2035 = vmul.f32 %v2033, 0.2
  %v2036 = vmul.f32 %v2034, 0.2
  %v2037 = vmax.f32 %v2033, %v2035
  %v2038 = vmax.f32 %v2034, %v2036
  %2040 = vset.pattern.permute.xlu0 15
  %2041 = vperm.xlu0 %2040, %v2019
  %v2042 = vpop.permute.xlu0 %2041
  %2045 = vset.pattern.permute.xlu0 15
  %2046 = vperm.xlu0 %2045, %v2020
  %v2047 = vpop.permute.xlu0 %2046
  %v2049 = vsub.f32 %v2037, %v2042
  %v2050 = vsub.f32 %v2038, %v2047
  %v2051 = vmul.f32 %v2049, 1.442695
  %v2052 = vpow.pop %v2051
  %v2053 = vmul.f32 %v2050, 1.442695
  %v2054 = vpow.pop %v2053
  %v2055 = vmul.f32 %v2052, %v1890
  %v2056 = vmul.f32 %v2054, %v1891
  %2057 = vrot.lane.b32.xlu0 %v1775, 121
  %v2058 = vpop.permute.xlu0 %2057
  %2059 = vrot.lane.b32.xlu0 %v1780, 121
  %v2060 = vpop.permute.xlu0 %2059
  %v2064 = vsel %vm258, %v2055, 0
  %v2067 = vsel %vm258, %v2056, 0
  %2069 = vmatprep.subr.mxu0 0.0
  %2070 = vmatpush1.msra.mxu0 %v2058
  %2071 = vmatprep.subr.mxu0 0.0
  %2072 = vmatpush1.msra.mxu0 %v2060
  %2073 = vmatprep.subr.mxu0 0.0
  %2074 = vmatpush1.msra.mxu0 0.0
  %2075 = vmatprep.subr.mxu0 0.0
  %2076 = vmatpush1.msra.mxu0 0.0
  %2077 = vmatprep.subr.mxu0 0.0
  %2078 = vmatpush1.msra.mxu0 0.0
  %2079 = vmatprep.subr.mxu0 0.0
  %2080 = vmatpush1.msra.mxu0 0.0
  %2081 = vmatprep.subr.mxu0 0.0
  %2082 = vmatpush1.msra.mxu0 0.0
  %2083 = vmatprep.subr.mxu0 0.0
  %2084 = vmatpush1.msra.mxu0 0.0
  %2085 = vmatprep.subr.mxu0 0.0
  %2086 = vmatpush1.msra.mxu0 0.0
  %2087 = vmatprep.subr.mxu0 0.0
  %2088 = vmatpush1.msra.mxu0 0.0
  %2089 = vmatprep.subr.mxu0 0.0
  %2090 = vmatpush1.msra.mxu0 0.0
  %2091 = vmatprep.subr.mxu0 0.0
  %2092 = vmatpush1.msra.mxu0 0.0
  %2093 = vmatprep.subr.mxu0 0.0
  %2094 = vmatpush1.msra.mxu0 0.0
  %2095 = vmatprep.subr.mxu0 0.0
  %2096 = vmatpush1.msra.mxu0 0.0
  %2097 = vmatprep.subr.mxu0 0.0
  %2098 = vmatpush1.msra.mxu0 0.0
  %2099 = vmatprep.subr.mxu0 0.0
  %2100 = vmatpush1.msra.mxu0 0.0
  %2101 = vmatprep.subr.mxu0 0.0
  %2102 = vmatpush1.msra.mxu0 0.0
  %2103 = vmatprep.subr.mxu0 0.0
  %2104 = vmatpush1.msra.mxu0 0.0
  %2105 = vmatprep.subr.mxu0 0.0
  %2106 = vmatpush1.msra.mxu0 0.0
  %2107 = vmatprep.subr.mxu0 0.0
  %2108 = vmatpush1.msra.mxu0 0.0
  %2109 = vmatprep.subr.mxu0 0.0
  %2110 = vmatpush1.msra.mxu0 0.0
  %2111 = vmatprep.subr.mxu0 0.0
  %2112 = vmatpush1.msra.mxu0 0.0
  %2113 = vmatprep.subr.mxu0 0.0
  %2114 = vmatpush1.msra.mxu0 0.0
  %2115 = vmatprep.subr.mxu0 0.0
  %2116 = vmatpush1.msra.mxu0 0.0
  %2117 = vmatprep.subr.mxu0 0.0
  %2118 = vmatpush1.msra.mxu0 0.0
  %2119 = vmatprep.subr.mxu0 0.0
  %2120 = vmatpush1.msra.mxu0 0.0
  %2121 = vmatprep.subr.mxu0 0.0
  %2122 = vmatpush1.msra.mxu0 0.0
  %2123 = vmatprep.subr.mxu0 0.0
  %2124 = vmatpush1.msra.mxu0 0.0
  %2125 = vmatprep.subr.mxu0 0.0
  %2126 = vmatpush1.msra.mxu0 0.0
  %2127 = vmatprep.subr.mxu0 0.0
  %2128 = vmatpush1.msra.mxu0 0.0
  %2129 = vmatprep.subr.mxu0 0.0
  %2130 = vmatpush1.msra.mxu0 0.0
  %2131 = vmatprep.subr.mxu0 0.0
  %2132 = vmatpush1.msra.mxu0 0.0
  %2133 = vmatprep.mubr.f32.mxu0 0.0
  %2134 = vmatmul.mubr.f32.gmra.mrb[0].mxu0 %v2064
  %v2135 = vpop.f32.mrb[0].mxu0
  %v2136 = vadd.f32 0.0, %v2135
  %v2137 = vpop.f32.mrb[0].mxu0
  %2138 = vmatprep.mubr.f32.mxu0 0.0
  %2139 = vmatmul.mubr.f32.gmra.mrb[0].mxu0 %v2067
  %v2140 = vpop.f32.mrb[0].mxu0
  %v2141 = vadd.f32 0.0, %v2140
  %v2142 = vpop.f32.mrb[0].mxu0
  %2143 = vdwg.mxu0
  %v2144 = vmax.f32 %v2136, 1e-30
  %v2145 = vmax.f32 %v2141, 1e-30
  %v2146 = vrcp.pop %v2144
  %v2147 = vrcp.pop %v2145
  %2149 = vset.pattern.permute.xlu0 6
  %2150 = vperm.xlu0 %2149, %v2146
  %v2151 = vpop.permute.xlu0 %2150
  %2154 = vset.pattern.permute.xlu0 6
  %2155 = vperm.xlu0 %2154, %v2147
  %v2156 = vpop.permute.xlu0 %2155
  %v2158 = vmul.f32 %v2136, %v2151
  %v2159 = vmul.f32 %v2141, %v2156
  %v2160 = vmul.f32 %v2158, 0.01
  %v2161 = vmul.f32 %v2159, 0.01
  %v2162 = vmax.f32 %v2158, %v2160
  %v2163 = vmax.f32 %v2159, %v2161
  %v2164 = vadd.f32 %v2009, %v2162
  %v2165 = vadd.f32 %v2010, %v2163
  %v2166 = vmul.f32 %v2164, 0.5
  %v2167 = vmul.f32 %v2165, 0.5
  %vm2168 = vcmask 48128
  %2169 = vst.msk [vmem:[%s11] sm:$0xff] %vm2168, %v2166
  %2170 = vst.msk [vmem:[%s11 + $0x8] sm:$0xff] %vm2168, %v2167
  // Predicated region
  $region46: #{tpu_custom_call.1} parent=0 // pred_check
    _
  $region47: #{tpu_custom_call.1} parent=0 // pred_check_branch
    %2172 = sbr.rel (0) target = $region49
  $region48: #{tpu_custom_call.1} parent=0 // pred_region
    _
  $region49: #{tpu_custom_call.1} parent=0 // pred_fallthru
    _
  // Predicated region
  $region50: #{tpu_custom_call.1} parent=0 // pred_check
    _
  $region51: #{tpu_custom_call.1} parent=0 // pred_check_branch
    %2174 = sbr.rel (0) target = $region53
  $region52: #{tpu_custom_call.1} parent=0 // pred_region
    _
  $region53: #{tpu_custom_call.1} parent=0 // pred_fallthru
    _

</llo_original>
